<compile_context>
chip_gen: v5e
topology: v5e:2x2
jax: 0.10.0
libtpu: 0.0.40
codegen_flags: <defaults>
</compile_context>

<pallas_src>
import functools

import jax
import jax.numpy as jnp
import numpy as np
from jax.experimental import pallas as pl
from jax.experimental.pallas import tpu as pltpu

LEAKY_SLOPE = 0.01          # nn.LeakyReLU default
BN_EPS = 1e-5               # nn.BatchNorm1d default
CNN_CH = 4                  # hard-coded by nn.Conv1d(..., out_channels=4)


def _leaky_relu(v):
    return jnp.where(v >= 0, v, LEAKY_SLOPE * v)


def _nfn_kernel(F1, K, B, group, U1, U2,
                xc_ref, lc_ref, p_ref, convwb_ref, out_ref):
    """Fused fc1 -> BN(batch stats) -> LeakyReLU -> [conv1d+maxpool] -> fc2
    -> LeakyReLU for `group` independent instances (each its own BN batch of B).

    Packed parameter array p_ref rows:
      [0, F1)                    : w1            (F1, U1)
      [F1, F1+2)                 : gamma ; beta  (2,  U1)
      [F1+2, F1+2+U1)            : w2a           (U1, U2)
      [F1+2+U1, F1+2+U1+4)       : w2b           (4,  U2)
      F1+2+U1+4                  : b2            (1,  U2)
    convwb_ref (SMEM, 1-D): CNN_CH blocks of (K weights + 1 bias).
    """
    GB = group * B
    T = lc_ref.shape[2]
    L_out = T - K + 1
    r_bn = F1
    r_w2a = F1 + 2
    r_w2b = r_w2a + U1
    r_b2 = r_w2b + CNN_CH

    # ---- fc1 (MXU). fc1 bias dropped: it cancels exactly under batch-stat BN.
    xc = xc_ref[0]                                     # (GB, F1), budget in col F1-1
    h = jnp.dot(xc, p_ref[0:F1, 0:U1],
                preferred_element_type=jnp.float32)    # (GB, U1)

    # ---- BatchNorm1d per instance (training mode, biased variance).
    # Centered two-pass variance avoids cancellation; fused affine afterwards.
    gamma = p_ref[r_bn:r_bn + 1, 0:U1]                 # (1, U1)
    beta = p_ref[r_bn + 1:r_bn + 2, 0:U1]              # (1, U1)
    h3 = h.reshape(group, B, U1)
    mean = jnp.mean(h3, axis=1, keepdims=True)         # (G, 1, U1)
    d = h3 - mean
    var = jnp.mean(d * d, axis=1, keepdims=True)       # (G, 1, U1)
    scale = gamma * jax.lax.rsqrt(var + BN_EPS)        # EUP rsqrt
    h3 = _leaky_relu(d * scale + beta)
    hf = h3.reshape(GB, U1)

    # ---- fc2: MLP branch + bias (MXU).
    out = jnp.dot(hf, p_ref[r_w2a:r_w2a + U1, 0:U2],
                  preferred_element_type=jnp.float32)
    out = out + p_ref[r_b2:r_b2 + 1, 0:U2]

    # ---- Conv1d(1->4, K) + global max pool, folded into fc2 via four rank-1
    # VPU broadcast-FMAs (no lane concat, no extra MXU push/pop).
    lc = lc_ref[0]                                     # (GB, T)
    taps = [lc[:, k:k + L_out] for k in range(K)]      # K unique lane slices
    for c in range(CNN_CH):
        base = c * (K + 1)
        acc = taps[0] * convwb_ref[base + 0]
        for k in range(1, K):
            acc = acc + taps[k] * convwb_ref[base + k]
        pooled = jnp.max(acc, axis=1, keepdims=True) + convwb_ref[base + K]   # (GB, 1)
        out = out + pooled * p_ref[r_w2b + c:r_w2b + c + 1, 0:U2]             # rank-1

    out = _leaky_relu(out)                             # (GB, U2)

    # ---- lane-dense output: pack the group's instances along lanes -> (B, G*U2).
    out3 = out.reshape(group, B, U2)
    out_ref[0] = jnp.concatenate([out3[g] for g in range(group)], axis=1)


def _choose_group(n_instances, b, f1, t, u2):
    """Generation-aware group size: 1 grid step on single-TC chips (v5e/v6e),
    2 even steps on dual-TC v7x so "parallel" shards across TensorCores.
    Capped by a VMEM-derived per-step budget."""
    try:
        kind = jax.devices()[0].device_kind.lower()
    except Exception:  # pragma: no cover - defensive
        kind = ""
    target_steps = 2 if ("v7" in kind and n_instances % 2 == 0) else 1
    group = max(1, n_instances // target_steps)

    # Per-instance, per-step resident footprint (double-buffered in/out) plus slack.
    per_inst = 2 * 4 * b * (f1 + t + u2) + 512
    try:
        vmem_budget = pltpu.get_tpu_info().vmem_capacity_bytes // 4
    except Exception:  # pragma: no cover - defensive
        vmem_budget = 16 << 20
    cap = max(1, int(vmem_budget // per_inst))
    group = min(group, cap)
    while n_instances % group:                         # largest divisor of N <= cap
        group -= 1
    return group


def nfn_feature_extractor_forward_packed(x, budgets, learning_curves, params, K,
                                         group=None):
    """Hot path. x: (N, B, F), budgets: (N, B), learning_curves: (N, B, T) for N
    independent problem instances sharing the same parameters.
    Returns (out_packed, group) where out_packed is (N//group, B, group*U2) with
    instance g of a grid step occupying lanes [g*U2, (g+1)*U2)."""
    N, B, F = x.shape
    T = learning_curves.shape[2]
    F1 = F + 1
    U1 = params["w1"].shape[1]
    U2 = params["w2"].shape[1]

    if group is None:
        group = _choose_group(N, B, F1, T, U2)
    assert N % group == 0, "number of instances must be divisible by the group size"
    ng = N // group
    # Perf note: B % 8 == 0 and (group*U2) % 128 == 0 keep stores unmasked /
    # avoid (8,128) relayouts; correctness does not depend on it.

    # Fold the budget column into x wrapper-side (tiny one-time concat) -> one
    # fewer operand and no in-kernel rank-1 correction.
    xc = jnp.concatenate([x, budgets[..., None]], axis=-1)        # (N, B, F1)

    # Pack ALL dense parameters into ONE VMEM operand (widths padded to max(U1,U2)).
    U = max(U1, U2)
    rows = F1 + 2 + params["w2"].shape[0]
    p = jnp.zeros((rows, U), jnp.float32)
    p = p.at[0:F1, 0:U1].set(params["w1"])
    p = p.at[F1:F1 + 2, 0:U1].set(params["bn"])
    p = p.at[F1 + 2:, 0:U2].set(params["w2"])

    # Conv weight|bias as a flat 1-D SMEM array (avoids 2-D SMEM padding).
    convwb_flat = params["convwb"].reshape(-1).astype(jnp.float32)

    # Pure reshapes (no data movement): pack `group` instances per grid step.
    xg = xc.reshape(ng, group * B, F1)
    lcg = learning_curves.reshape(ng, group * B, T)

    kernel = functools.partial(_nfn_kernel, F1, K, B, group, U1, U2)
    out_packed = pl.pallas_call(
        kernel,
        out_shape=jax.ShapeDtypeStruct((ng, B, group * U2), jnp.float32),
        grid=(ng,),
        in_specs=[
            pl.BlockSpec((1, group * B, F1), lambda g: (g, 0, 0)),   # x ++ budget
            pl.BlockSpec((1, group * B, T), lambda g: (g, 0, 0)),    # learning curves
            pl.BlockSpec(p.shape, lambda g: (0, 0)),                 # packed params
            pl.BlockSpec(memory_space=pltpu.MemorySpace.SMEM),       # conv W|b scalars
        ],
        out_specs=pl.BlockSpec((1, B, group * U2), lambda g: (g, 0, 0)),
        compiler_params=pltpu.CompilerParams(
            dimension_semantics=("parallel",)),
    )(xg, lcg, p, convwb_flat)
    return out_packed, group


def unpack_nfn_output(out_packed, group, U2):
    """Layout glue only: (ng, B, group*U2) -> (N, B, U2). Skip it if the
    consumer can read the lane-packed layout directly."""
    ng, B, _ = out_packed.shape
    out = out_packed.reshape(ng, B, group, U2).transpose(0, 2, 1, 3)
    return out.reshape(ng * group, B, U2)


def nfn_feature_extractor_forward(x, budgets, learning_curves, params, K,
                                  group=None):
    """Module-faithful output layout: (N, B, U2)."""
    out_packed, g = nfn_feature_extractor_forward_packed(
        x, budgets, learning_curves, params, K, group=group)
    return unpack_nfn_output(out_packed, g, params["w2"].shape[1])


def reference_forward(x, budgets, learning_curves, params, K):
    """Pure-JAX reference matching the PyTorch forward (includes the fc1 bias,
    which the kernel legitimately drops because batch-stat BN cancels it)."""
    xc = jnp.concatenate([x, budgets[..., None]], axis=-1)          # (N, B, F+1)
    h = jnp.einsum("nbf,fu->nbu", xc, params["w1"]) + params["b1"]
    mean = h.mean(axis=1, keepdims=True)
    var = ((h - mean) ** 2).mean(axis=1, keepdims=True)             # biased var
    gamma, beta = params["bn"][0], params["bn"][1]
    h = (h - mean) / jnp.sqrt(var + BN_EPS) * gamma + beta
    h = _leaky_relu(h)

    T = learning_curves.shape[-1]
    L_out = T - K + 1
    convw, convb = params["convwb"][:, :K], params["convwb"][:, K]
    chans = []
    for c in range(CNN_CH):
        acc = sum(learning_curves[..., k:k + L_out] * convw[c, k]
                  for k in range(K))
        chans.append(acc.max(axis=-1) + convb[c])
    lc_feat = jnp.stack(chans, axis=-1)                             # (N, B, 4)

    U1 = params["w1"].shape[1]
    w2a = params["w2"][:U1]
    w2b = params["w2"][U1:U1 + CNN_CH]
    b2 = params["w2"][U1 + CNN_CH]
    out = (jnp.einsum("nbu,uv->nbv", h, w2a)
           + jnp.einsum("nbc,cv->nbv", lc_feat, w2b) + b2)
    return _leaky_relu(out)


if __name__ == "__main__":
    # nr_layers=2, nr_initial_features=7, layer1_units=32, layer2_units=32,
    # cnn_kernel_size=3, cnn_nr_channels=4, use_cnn=True, use_weights=False.
    # N = 16 independent instances, each a batch of B = 8.
    N, B, F, T = 16, 8, 7, 16
    U1, U2, K = 32, 32, 3

    key = jax.random.PRNGKey(0)
    ks = jax.random.split(key, 12)

    x = jax.random.normal(ks[0], (N, B, F), jnp.float32)
    budgets = jax.random.uniform(ks[1], (N, B), jnp.float32)
    learning_curves = jax.random.normal(ks[2], (N, B, T), jnp.float32)

    w2a = 0.2 * jax.random.normal(ks[8], (U1, U2), jnp.float32)
    w2b = 0.2 * jax.random.normal(ks[9], (CNN_CH, U2), jnp.float32)
    b2 = 0.1 * jax.random.normal(ks[10], (1, U2), jnp.float32)

    params = {
        # Linear weights are pre-transposed to (in_features, out_features).
        "w1": 0.2 * jax.random.normal(ks[3], (F + 1, U1), jnp.float32),
        "b1": 0.1 * jax.random.normal(ks[4], (1, U1), jnp.float32),   # reference only
        "bn": jnp.concatenate([
            1.0 + 0.1 * jax.random.normal(ks[5], (1, U1), jnp.float32),   # gamma
            0.1 * jax.random.normal(ks[6], (1, U1), jnp.float32)],        # beta
            axis=0),
        "convwb": jnp.concatenate([
            0.3 * jax.random.normal(ks[7], (CNN_CH, K), jnp.float32),     # weights
            0.1 * jax.random.normal(ks[11], (CNN_CH, 1), jnp.float32)],   # bias
            axis=1),
        "w2": jnp.concatenate([w2a, w2b, b2], axis=0),                    # (U1+4+1, U2)
    }

    # TODO(synk): use_weights branch (process_state_dicts with NPLinear/HNPPool
    # neural functionals) relies on external NFN library code not included in
    # the module source; it is not implemented here (use_weights=False).

    # Hot path: lane-packed output, no wrapper-side transpose.
    out_packed, group = nfn_feature_extractor_forward_packed(
        x, budgets, learning_curves, params, K)
    out_packed = jax.block_until_ready(out_packed)

    # Module-faithful layout (pure layout glue) for the correctness check.
    out = unpack_nfn_output(out_packed, group, U2)

    ref = reference_forward(x, budgets, learning_curves, params, K)
    np.testing.assert_allclose(np.asarray(out), np.asarray(ref),
                               rtol=1e-4, atol=1e-4)

    print("KERNEL_OK")
</pallas_src>

<mosaic_0001>
module attributes {stable_mosaic.version = 11 : i64} {
  func.func @_nfn_kernel(%arg0: i32, %arg1: memref<1x128x8xf32, #tpu.memory_space<vmem>>, %arg2: memref<1x128x16xf32, #tpu.memory_space<vmem>>, %arg3: memref<47x32xf32, #tpu.memory_space<vmem>>, %arg4: memref<16xf32, #tpu.memory_space<smem>>, %arg5: memref<1x8x512xf32, #tpu.memory_space<vmem>>) attributes {dimension_semantics = [#tpu.dimension_semantics<parallel>], iteration_bounds = array<i64: 1>, scalar_prefetch = 0 : i64, scratch_operands = 0 : i64, tpu.core_type = #tpu.core_type<tc>, window_params = [{transform_indices = @transform_0, window_bounds = array<i64: 1, 128, 8>}, {transform_indices = @transform_1, window_bounds = array<i64: 1, 128, 16>}, {pipeline_mode = #tpu.pipeline_mode<synchronous>, transform_indices = @transform_2, window_bounds = array<i64: 47, 32>}, {transform_indices = @transform_3, window_bounds = array<i64: 16>}, {transform_indices = @transform_4, window_bounds = array<i64: 1, 8, 512>}]} {
    %c0 = arith.constant 0 : index
    %c0_0 = arith.constant 0 : index
    %c0_1 = arith.constant 0 : index
    %0 = vector.load %arg1[%c0, %c0_0, %c0_1] : memref<1x128x8xf32, #tpu.memory_space<vmem>>, vector<1x128x8xf32>
    %1 = vector.shape_cast %0 : vector<1x128x8xf32> to vector<128x8xf32>
    %c0_2 = arith.constant 0 : index
    %c0_3 = arith.constant 0 : index
    %2 = vector.load %arg3[%c0_2, %c0_3] : memref<47x32xf32, #tpu.memory_space<vmem>>, vector<8x32xf32>
    %cst = arith.constant dense<0.000000e+00> : vector<128x32xf32>
    %3 = tpu.matmul %1, %2, %cst {dimension_numbers = #tpu.dot_dimension_numbers<[1], [0], [0], [1], [0, 0, 1, 1], [], []>} : vector<128x8xf32>, vector<8x32xf32>, vector<128x32xf32> -> vector<128x32xf32>
    %c8 = arith.constant 8 : index
    %c0_4 = arith.constant 0 : index
    %4 = vector.load %arg3[%c8, %c0_4] : memref<47x32xf32, #tpu.memory_space<vmem>>, vector<1x32xf32>
    %c9 = arith.constant 9 : index
    %c0_5 = arith.constant 0 : index
    %5 = vector.load %arg3[%c9, %c0_5] : memref<47x32xf32, #tpu.memory_space<vmem>>, vector<1x32xf32>
    %6 = vector.shape_cast %3 : vector<128x32xf32> to vector<16x8x32xf32>
    %cst_6 = arith.constant dense<0.000000e+00> : vector<16x32xf32>
    %7 = vector.multi_reduction <add>, %6, %cst_6 [1] : vector<16x8x32xf32> to vector<16x32xf32>
    %8 = vector.shape_cast %7 : vector<16x32xf32> to vector<16x1x32xf32>
    %cst_7 = arith.constant 8.000000e+00 : f32
    %9 = vector.broadcast %cst_7 : f32 to vector<16x1x32xf32>
    %10 = arith.divf %8, %9 : vector<16x1x32xf32>
    %11 = vector.broadcast %10 : vector<16x1x32xf32> to vector<16x8x32xf32>
    %12 = arith.subf %6, %11 : vector<16x8x32xf32>
    %13 = arith.mulf %12, %12 : vector<16x8x32xf32>
    %cst_8 = arith.constant dense<0.000000e+00> : vector<16x32xf32>
    %14 = vector.multi_reduction <add>, %13, %cst_8 [1] : vector<16x8x32xf32> to vector<16x32xf32>
    %15 = vector.shape_cast %14 : vector<16x32xf32> to vector<16x1x32xf32>
    %cst_9 = arith.constant 8.000000e+00 : f32
    %16 = vector.broadcast %cst_9 : f32 to vector<16x1x32xf32>
    %17 = arith.divf %15, %16 : vector<16x1x32xf32>
    %cst_10 = arith.constant 9.99999974E-6 : f32
    %18 = vector.broadcast %cst_10 : f32 to vector<16x1x32xf32>
    %19 = arith.addf %17, %18 : vector<16x1x32xf32>
    %20 = math.rsqrt %19 : vector<16x1x32xf32>
    %21 = vector.shape_cast %4 : vector<1x32xf32> to vector<1x1x32xf32>
    %22 = vector.broadcast %21 : vector<1x1x32xf32> to vector<16x1x32xf32>
    %23 = arith.mulf %22, %20 : vector<16x1x32xf32>
    %24 = vector.broadcast %23 : vector<16x1x32xf32> to vector<16x8x32xf32>
    %25 = arith.mulf %12, %24 : vector<16x8x32xf32>
    %26 = vector.shape_cast %5 : vector<1x32xf32> to vector<1x1x32xf32>
    %27 = vector.broadcast %26 : vector<1x1x32xf32> to vector<16x8x32xf32>
    %28 = arith.addf %25, %27 : vector<16x8x32xf32>
    %cst_11 = arith.constant 0.000000e+00 : f32
    %29 = vector.broadcast %cst_11 : f32 to vector<16x8x32xf32>
    %30 = arith.cmpf oge, %28, %29 : vector<16x8x32xf32>
    %cst_12 = arith.constant 0.00999999977 : f32
    %31 = vector.broadcast %cst_12 : f32 to vector<16x8x32xf32>
    %32 = arith.mulf %31, %28 : vector<16x8x32xf32>
    %33 = arith.select %30, %28, %32 : vector<16x8x32xi1>, vector<16x8x32xf32>
    %34 = vector.shape_cast %33 : vector<16x8x32xf32> to vector<128x32xf32>
    %c10 = arith.constant 10 : index
    %c0_13 = arith.constant 0 : index
    %35 = vector.load %arg3[%c10, %c0_13] : memref<47x32xf32, #tpu.memory_space<vmem>>, vector<32x32xf32>
    %cst_14 = arith.constant dense<0.000000e+00> : vector<128x32xf32>
    %36 = tpu.matmul %34, %35, %cst_14 {dimension_numbers = #tpu.dot_dimension_numbers<[1], [0], [0], [1], [0, 0, 1, 1], [], []>} : vector<128x32xf32>, vector<32x32xf32>, vector<128x32xf32> -> vector<128x32xf32>
    %c46 = arith.constant 46 : index
    %c0_15 = arith.constant 0 : index
    %37 = vector.load %arg3[%c46, %c0_15] : memref<47x32xf32, #tpu.memory_space<vmem>>, vector<1x32xf32>
    %38 = vector.broadcast %37 : vector<1x32xf32> to vector<128x32xf32>
    %39 = arith.addf %36, %38 : vector<128x32xf32>
    %c0_16 = arith.constant 0 : index
    %c0_17 = arith.constant 0 : index
    %c0_18 = arith.constant 0 : index
    %40 = vector.load %arg2[%c0_16, %c0_17, %c0_18] : memref<1x128x16xf32, #tpu.memory_space<vmem>>, vector<1x128x16xf32>
    %41 = vector.shape_cast %40 : vector<1x128x16xf32> to vector<128x16xf32>
    %42 = vector.extract_strided_slice %41 {offsets = [0, 0], sizes = [128, 14], strides = [1, 1]} : vector<128x16xf32> to vector<128x14xf32>
    %43 = vector.extract_strided_slice %41 {offsets = [0, 1], sizes = [128, 14], strides = [1, 1]} : vector<128x16xf32> to vector<128x14xf32>
    %44 = vector.extract_strided_slice %41 {offsets = [0, 2], sizes = [128, 14], strides = [1, 1]} : vector<128x16xf32> to vector<128x14xf32>
    %c0_19 = arith.constant 0 : index
    %45 = memref.load %arg4[%c0_19] : memref<16xf32, #tpu.memory_space<smem>>
    %46 = vector.broadcast %45 : f32 to vector<128x14xf32>
    %47 = arith.mulf %42, %46 : vector<128x14xf32>
    %c1 = arith.constant 1 : index
    %48 = memref.load %arg4[%c1] : memref<16xf32, #tpu.memory_space<smem>>
    %49 = vector.broadcast %48 : f32 to vector<128x14xf32>
    %50 = arith.mulf %43, %49 : vector<128x14xf32>
    %51 = arith.addf %47, %50 : vector<128x14xf32>
    %c2 = arith.constant 2 : index
    %52 = memref.load %arg4[%c2] : memref<16xf32, #tpu.memory_space<smem>>
    %53 = vector.broadcast %52 : f32 to vector<128x14xf32>
    %54 = arith.mulf %44, %53 : vector<128x14xf32>
    %55 = arith.addf %51, %54 : vector<128x14xf32>
    %cst_20 = arith.constant dense<0xFF800000> : vector<128xf32>
    %56 = vector.multi_reduction <maximumf>, %55, %cst_20 [1] : vector<128x14xf32> to vector<128xf32>
    %57 = vector.shape_cast %56 : vector<128xf32> to vector<128x1xf32>
    %c3 = arith.constant 3 : index
    %58 = memref.load %arg4[%c3] : memref<16xf32, #tpu.memory_space<smem>>
    %59 = vector.broadcast %58 : f32 to vector<128x1xf32>
    %60 = arith.addf %57, %59 : vector<128x1xf32>
    %c42 = arith.constant 42 : index
    %c0_21 = arith.constant 0 : index
    %61 = vector.load %arg3[%c42, %c0_21] : memref<47x32xf32, #tpu.memory_space<vmem>>, vector<1x32xf32>
    %62 = vector.broadcast %60 : vector<128x1xf32> to vector<128x32xf32>
    %63 = vector.broadcast %61 : vector<1x32xf32> to vector<128x32xf32>
    %64 = arith.mulf %62, %63 : vector<128x32xf32>
    %65 = arith.addf %39, %64 : vector<128x32xf32>
    %c4 = arith.constant 4 : index
    %66 = memref.load %arg4[%c4] : memref<16xf32, #tpu.memory_space<smem>>
    %67 = vector.broadcast %66 : f32 to vector<128x14xf32>
    %68 = arith.mulf %42, %67 : vector<128x14xf32>
    %c5 = arith.constant 5 : index
    %69 = memref.load %arg4[%c5] : memref<16xf32, #tpu.memory_space<smem>>
    %70 = vector.broadcast %69 : f32 to vector<128x14xf32>
    %71 = arith.mulf %43, %70 : vector<128x14xf32>
    %72 = arith.addf %68, %71 : vector<128x14xf32>
    %c6 = arith.constant 6 : index
    %73 = memref.load %arg4[%c6] : memref<16xf32, #tpu.memory_space<smem>>
    %74 = vector.broadcast %73 : f32 to vector<128x14xf32>
    %75 = arith.mulf %44, %74 : vector<128x14xf32>
    %76 = arith.addf %72, %75 : vector<128x14xf32>
    %cst_22 = arith.constant dense<0xFF800000> : vector<128xf32>
    %77 = vector.multi_reduction <maximumf>, %76, %cst_22 [1] : vector<128x14xf32> to vector<128xf32>
    %78 = vector.shape_cast %77 : vector<128xf32> to vector<128x1xf32>
    %c7 = arith.constant 7 : index
    %79 = memref.load %arg4[%c7] : memref<16xf32, #tpu.memory_space<smem>>
    %80 = vector.broadcast %79 : f32 to vector<128x1xf32>
    %81 = arith.addf %78, %80 : vector<128x1xf32>
    %c43 = arith.constant 43 : index
    %c0_23 = arith.constant 0 : index
    %82 = vector.load %arg3[%c43, %c0_23] : memref<47x32xf32, #tpu.memory_space<vmem>>, vector<1x32xf32>
    %83 = vector.broadcast %81 : vector<128x1xf32> to vector<128x32xf32>
    %84 = vector.broadcast %82 : vector<1x32xf32> to vector<128x32xf32>
    %85 = arith.mulf %83, %84 : vector<128x32xf32>
    %86 = arith.addf %65, %85 : vector<128x32xf32>
    %c8_24 = arith.constant 8 : index
    %87 = memref.load %arg4[%c8_24] : memref<16xf32, #tpu.memory_space<smem>>
    %88 = vector.broadcast %87 : f32 to vector<128x14xf32>
    %89 = arith.mulf %42, %88 : vector<128x14xf32>
    %c9_25 = arith.constant 9 : index
    %90 = memref.load %arg4[%c9_25] : memref<16xf32, #tpu.memory_space<smem>>
    %91 = vector.broadcast %90 : f32 to vector<128x14xf32>
    %92 = arith.mulf %43, %91 : vector<128x14xf32>
    %93 = arith.addf %89, %92 : vector<128x14xf32>
    %c10_26 = arith.constant 10 : index
    %94 = memref.load %arg4[%c10_26] : memref<16xf32, #tpu.memory_space<smem>>
    %95 = vector.broadcast %94 : f32 to vector<128x14xf32>
    %96 = arith.mulf %44, %95 : vector<128x14xf32>
    %97 = arith.addf %93, %96 : vector<128x14xf32>
    %cst_27 = arith.constant dense<0xFF800000> : vector<128xf32>
    %98 = vector.multi_reduction <maximumf>, %97, %cst_27 [1] : vector<128x14xf32> to vector<128xf32>
    %99 = vector.shape_cast %98 : vector<128xf32> to vector<128x1xf32>
    %c11 = arith.constant 11 : index
    %100 = memref.load %arg4[%c11] : memref<16xf32, #tpu.memory_space<smem>>
    %101 = vector.broadcast %100 : f32 to vector<128x1xf32>
    %102 = arith.addf %99, %101 : vector<128x1xf32>
    %c44 = arith.constant 44 : index
    %c0_28 = arith.constant 0 : index
    %103 = vector.load %arg3[%c44, %c0_28] : memref<47x32xf32, #tpu.memory_space<vmem>>, vector<1x32xf32>
    %104 = vector.broadcast %102 : vector<128x1xf32> to vector<128x32xf32>
    %105 = vector.broadcast %103 : vector<1x32xf32> to vector<128x32xf32>
    %106 = arith.mulf %104, %105 : vector<128x32xf32>
    %107 = arith.addf %86, %106 : vector<128x32xf32>
    %c12 = arith.constant 12 : index
    %108 = memref.load %arg4[%c12] : memref<16xf32, #tpu.memory_space<smem>>
    %109 = vector.broadcast %108 : f32 to vector<128x14xf32>
    %110 = arith.mulf %42, %109 : vector<128x14xf32>
    %c13 = arith.constant 13 : index
    %111 = memref.load %arg4[%c13] : memref<16xf32, #tpu.memory_space<smem>>
    %112 = vector.broadcast %111 : f32 to vector<128x14xf32>
    %113 = arith.mulf %43, %112 : vector<128x14xf32>
    %114 = arith.addf %110, %113 : vector<128x14xf32>
    %c14 = arith.constant 14 : index
    %115 = memref.load %arg4[%c14] : memref<16xf32, #tpu.memory_space<smem>>
    %116 = vector.broadcast %115 : f32 to vector<128x14xf32>
    %117 = arith.mulf %44, %116 : vector<128x14xf32>
    %118 = arith.addf %114, %117 : vector<128x14xf32>
    %cst_29 = arith.constant dense<0xFF800000> : vector<128xf32>
    %119 = vector.multi_reduction <maximumf>, %118, %cst_29 [1] : vector<128x14xf32> to vector<128xf32>
    %120 = vector.shape_cast %119 : vector<128xf32> to vector<128x1xf32>
    %c15 = arith.constant 15 : index
    %121 = memref.load %arg4[%c15] : memref<16xf32, #tpu.memory_space<smem>>
    %122 = vector.broadcast %121 : f32 to vector<128x1xf32>
    %123 = arith.addf %120, %122 : vector<128x1xf32>
    %c45 = arith.constant 45 : index
    %c0_30 = arith.constant 0 : index
    %124 = vector.load %arg3[%c45, %c0_30] : memref<47x32xf32, #tpu.memory_space<vmem>>, vector<1x32xf32>
    %125 = vector.broadcast %123 : vector<128x1xf32> to vector<128x32xf32>
    %126 = vector.broadcast %124 : vector<1x32xf32> to vector<128x32xf32>
    %127 = arith.mulf %125, %126 : vector<128x32xf32>
    %128 = arith.addf %107, %127 : vector<128x32xf32>
    %cst_31 = arith.constant 0.000000e+00 : f32
    %129 = vector.broadcast %cst_31 : f32 to vector<128x32xf32>
    %130 = arith.cmpf oge, %128, %129 : vector<128x32xf32>
    %cst_32 = arith.constant 0.00999999977 : f32
    %131 = vector.broadcast %cst_32 : f32 to vector<128x32xf32>
    %132 = arith.mulf %131, %128 : vector<128x32xf32>
    %133 = arith.select %130, %128, %132 : vector<128x32xi1>, vector<128x32xf32>
    %134 = vector.shape_cast %133 : vector<128x32xf32> to vector<16x8x32xf32>
    %135 = vector.extract_strided_slice %134 {offsets = [0, 0, 0], sizes = [1, 8, 32], strides = [1, 1, 1]} : vector<16x8x32xf32> to vector<1x8x32xf32>
    %136 = vector.shape_cast %135 : vector<1x8x32xf32> to vector<8x32xf32>
    %137 = vector.extract_strided_slice %134 {offsets = [1, 0, 0], sizes = [1, 8, 32], strides = [1, 1, 1]} : vector<16x8x32xf32> to vector<1x8x32xf32>
    %138 = vector.shape_cast %137 : vector<1x8x32xf32> to vector<8x32xf32>
    %139 = vector.extract_strided_slice %134 {offsets = [2, 0, 0], sizes = [1, 8, 32], strides = [1, 1, 1]} : vector<16x8x32xf32> to vector<1x8x32xf32>
    %140 = vector.shape_cast %139 : vector<1x8x32xf32> to vector<8x32xf32>
    %141 = vector.extract_strided_slice %134 {offsets = [3, 0, 0], sizes = [1, 8, 32], strides = [1, 1, 1]} : vector<16x8x32xf32> to vector<1x8x32xf32>
    %142 = vector.shape_cast %141 : vector<1x8x32xf32> to vector<8x32xf32>
    %143 = vector.extract_strided_slice %134 {offsets = [4, 0, 0], sizes = [1, 8, 32], strides = [1, 1, 1]} : vector<16x8x32xf32> to vector<1x8x32xf32>
    %144 = vector.shape_cast %143 : vector<1x8x32xf32> to vector<8x32xf32>
    %145 = vector.extract_strided_slice %134 {offsets = [5, 0, 0], sizes = [1, 8, 32], strides = [1, 1, 1]} : vector<16x8x32xf32> to vector<1x8x32xf32>
    %146 = vector.shape_cast %145 : vector<1x8x32xf32> to vector<8x32xf32>
    %147 = vector.extract_strided_slice %134 {offsets = [6, 0, 0], sizes = [1, 8, 32], strides = [1, 1, 1]} : vector<16x8x32xf32> to vector<1x8x32xf32>
    %148 = vector.shape_cast %147 : vector<1x8x32xf32> to vector<8x32xf32>
    %149 = vector.extract_strided_slice %134 {offsets = [7, 0, 0], sizes = [1, 8, 32], strides = [1, 1, 1]} : vector<16x8x32xf32> to vector<1x8x32xf32>
    %150 = vector.shape_cast %149 : vector<1x8x32xf32> to vector<8x32xf32>
    %151 = vector.extract_strided_slice %134 {offsets = [8, 0, 0], sizes = [1, 8, 32], strides = [1, 1, 1]} : vector<16x8x32xf32> to vector<1x8x32xf32>
    %152 = vector.shape_cast %151 : vector<1x8x32xf32> to vector<8x32xf32>
    %153 = vector.extract_strided_slice %134 {offsets = [9, 0, 0], sizes = [1, 8, 32], strides = [1, 1, 1]} : vector<16x8x32xf32> to vector<1x8x32xf32>
    %154 = vector.shape_cast %153 : vector<1x8x32xf32> to vector<8x32xf32>
    %155 = vector.extract_strided_slice %134 {offsets = [10, 0, 0], sizes = [1, 8, 32], strides = [1, 1, 1]} : vector<16x8x32xf32> to vector<1x8x32xf32>
    %156 = vector.shape_cast %155 : vector<1x8x32xf32> to vector<8x32xf32>
    %157 = vector.extract_strided_slice %134 {offsets = [11, 0, 0], sizes = [1, 8, 32], strides = [1, 1, 1]} : vector<16x8x32xf32> to vector<1x8x32xf32>
    %158 = vector.shape_cast %157 : vector<1x8x32xf32> to vector<8x32xf32>
    %159 = vector.extract_strided_slice %134 {offsets = [12, 0, 0], sizes = [1, 8, 32], strides = [1, 1, 1]} : vector<16x8x32xf32> to vector<1x8x32xf32>
    %160 = vector.shape_cast %159 : vector<1x8x32xf32> to vector<8x32xf32>
    %161 = vector.extract_strided_slice %134 {offsets = [13, 0, 0], sizes = [1, 8, 32], strides = [1, 1, 1]} : vector<16x8x32xf32> to vector<1x8x32xf32>
    %162 = vector.shape_cast %161 : vector<1x8x32xf32> to vector<8x32xf32>
    %163 = vector.extract_strided_slice %134 {offsets = [14, 0, 0], sizes = [1, 8, 32], strides = [1, 1, 1]} : vector<16x8x32xf32> to vector<1x8x32xf32>
    %164 = vector.shape_cast %163 : vector<1x8x32xf32> to vector<8x32xf32>
    %165 = vector.extract_strided_slice %134 {offsets = [15, 0, 0], sizes = [1, 8, 32], strides = [1, 1, 1]} : vector<16x8x32xf32> to vector<1x8x32xf32>
    %166 = vector.shape_cast %165 : vector<1x8x32xf32> to vector<8x32xf32>
    %167 = tpu.concatenate %136, %138, %140, %142, %144, %146, %148, %150, %152, %154, %156, %158, %160, %162, %164, %166 in 1 : vector<8x32xf32>, vector<8x32xf32>, vector<8x32xf32>, vector<8x32xf32>, vector<8x32xf32>, vector<8x32xf32>, vector<8x32xf32>, vector<8x32xf32>, vector<8x32xf32>, vector<8x32xf32>, vector<8x32xf32>, vector<8x32xf32>, vector<8x32xf32>, vector<8x32xf32>, vector<8x32xf32>, vector<8x32xf32> -> vector<8x512xf32>
    %c0_33 = arith.constant 0 : index
    %c0_34 = arith.constant 0 : index
    %c0_35 = arith.constant 0 : index
    %168 = vector.load %arg5[%c0_33, %c0_34, %c0_35] : memref<1x8x512xf32, #tpu.memory_space<vmem>>, vector<1x8x512xf32>
    %169 = vector.shape_cast %168 : vector<1x8x512xf32> to vector<8x512xf32>
    %170 = vector.shape_cast %167 : vector<8x512xf32> to vector<1x8x512xf32>
    tpu.vector_store %arg5[%c0_33, %c0_34, %c0_35], %170 {strides = array<i32>} : memref<1x8x512xf32, #tpu.memory_space<vmem>>, vector<1x8x512xf32>,
    return
  }
  func.func @transform_0(%arg0: i32) -> (i32, i32, i32) {
    %c0_i32 = arith.constant 0 : i32
    %c0_i32_0 = arith.constant 0 : i32
    %c0_i32_1 = arith.constant 0 : i32
    return %arg0, %c0_i32, %c0_i32_0 : i32, i32, i32
  }
  func.func @transform_1(%arg0: i32) -> (i32, i32, i32) {
    %c0_i32 = arith.constant 0 : i32
    %c0_i32_0 = arith.constant 0 : i32
    %c0_i32_1 = arith.constant 0 : i32
    return %arg0, %c0_i32, %c0_i32_0 : i32, i32, i32
  }
  func.func @transform_2(%arg0: i32) -> (i32, i32) {
    %c0_i32 = arith.constant 0 : i32
    %c0_i32_0 = arith.constant 0 : i32
    %c0_i32_1 = arith.constant 0 : i32
    return %c0_i32, %c0_i32_0 : i32, i32
  }
  func.func @transform_3(%arg0: i32) -> i32 {
    %c0_i32 = arith.constant 0 : i32
    %c0_i32_0 = arith.constant 0 : i32
    return %c0_i32 : i32
  }
  func.func @transform_4(%arg0: i32) -> (i32, i32, i32) {
    %c0_i32 = arith.constant 0 : i32
    %c0_i32_0 = arith.constant 0 : i32
    %c0_i32_1 = arith.constant 0 : i32
    return %arg0, %c0_i32, %c0_i32_0 : i32, i32, i32
  }
}

</mosaic_0001>

<llo_original>
// kernel: tpu_custom_call.1
$region0: #{tpu_custom_call.1}
  #allocation0 [shape = 'u32[]', space=smem, size = 0x4, offset = 0x4, fixed_abs, tag = 'smem constant byte address 0x4 - core index']
  #allocation1 [shape = 'u32[72,128]{1,0:T(1,128)}', space=vmem, size = 0x9000, scoped, tag = 'internal scratch']
  %s0 = inlined_call_operand.vmem [shape: f32[1,128,8], index: 0, kind: input, shape index: {}]
  %s1 = inlined_call_operand.vmem [shape: f32[1,128,16], index: 1, kind: input, shape index: {}]
  %s2 = inlined_call_operand.vmem [shape: f32[47,32], index: 2, kind: input, shape index: {}]
  %s3 = inlined_call_operand.vmem [shape: f32[16], index: 3, kind: input, shape index: {}]
  %s4 = inlined_call_operand.hbm [shape: f32[1,8,512], index: 4, kind: output, shape index: {}]
  %s5 = sld [smem:[#allocation0]]
  $region30: #{tpu_custom_call.1} parent=0
    _
  %s7 = ssub.s32 1, %s5
  %s8 = scalar_select 0, %s7, %s5
  $region1: #{tpu_custom_call.1} parent=0
    #allocation2 [shape = 'u8[512]{0}', space=smem, size = 0x200, scoped, tag = 'input window, operand 3, single buffered']
    #allocation3 [shape = 's32[1]{0}', space=sflag, size = 0x4, scoped, tag = 'scoped memory for tpu_custom_call.1']
    #allocation4 [shape = 's32[1]{0}', space=sflag, size = 0x4, scoped, tag = 'scoped memory for tpu_custom_call.1']
    #allocation5 [shape = 'u8[16384]{0}', space=vmem, size = 0x4000, scoped, tag = 'output window, operand 0, single buffered']
    %9 = vsyncpa [#allocation4], 0
    %10 = vsyncpa [#allocation3], 0
    // Predicated region
    $region2: #{tpu_custom_call.1} parent=1 // pred_check
      _
    $region3: #{tpu_custom_call.1} parent=1 // pred_check_branch
      %12 = sbr.rel (0) target = $region5
    $region4: #{tpu_custom_call.1} parent=1 // pred_region
      _
    $region5: #{tpu_custom_call.1} parent=1 // pred_fallthru
      _
    // Predicated region
    $region6: #{tpu_custom_call.1} parent=1 // pred_check
      _
    $region7: #{tpu_custom_call.1} parent=1 // pred_check_branch
      %14 = sbr.rel (0) target = $region9
    $region8: #{tpu_custom_call.1} parent=1 // pred_region
      _
    $region9: #{tpu_custom_call.1} parent=1 // pred_fallthru
      _
    // Predicated region
    $region10: #{tpu_custom_call.1} parent=1 // pred_check
      _
    $region11: #{tpu_custom_call.1} parent=1 // pred_check_branch
      %16 = sbr.rel (0) target = $region13
    $region12: #{tpu_custom_call.1} parent=1 // pred_region
      _
    $region13: #{tpu_custom_call.1} parent=1 // pred_fallthru
      _
    // Predicated region
    $region14: #{tpu_custom_call.1} parent=1 // pred_check
      _
    $region15: #{tpu_custom_call.1} parent=1 // pred_check_branch
      %18 = sbr.rel (0) target = $region17
    $region16: #{tpu_custom_call.1} parent=1 // pred_region
      %20 = vsyncadd [#allocation4], 0
      %s22 = sshll.u32 %s3, 4
      %s23 = int_to_ptr.vmem [resolvable:$true] %s22
      %25 = dma.vmem_to_smem %s23, 16, [#allocation2], [#allocation4]
    $region17: #{tpu_custom_call.1} parent=1 // pred_fallthru
      _
    // Predicated region
    $region18: #{tpu_custom_call.1} parent=1 // pred_check
      _
    $region19: #{tpu_custom_call.1} parent=1 // pred_check_branch
      %27 = sbr.rel (0) target = $region21
    $region20: #{tpu_custom_call.1} parent=1 // pred_region
      %29 = dma.done [#allocation4], 16
    $region21: #{tpu_custom_call.1} parent=1 // pred_fallthru
      _
    %30 = sfence
    %v31 = vld [vmem:[%s0] sm:$0xff]
    %v32 = vld [vmem:[%s0 + $0x8] sm:$0xff]
    %v33 = vld [vmem:[%s0 + $0x10] sm:$0xff]
    %v34 = vld [vmem:[%s0 + $0x18] sm:$0xff]
    %v35 = vld [vmem:[%s0 + $0x20] sm:$0xff]
    %v36 = vld [vmem:[%s0 + $0x28] sm:$0xff]
    %v37 = vld [vmem:[%s0 + $0x30] sm:$0xff]
    %v38 = vld [vmem:[%s0 + $0x38] sm:$0xff]
    %v39 = vld [vmem:[%s0 + $0x40] sm:$0xff]
    %v40 = vld [vmem:[%s0 + $0x48] sm:$0xff]
    %v41 = vld [vmem:[%s0 + $0x50] sm:$0xff]
    %v42 = vld [vmem:[%s0 + $0x58] sm:$0xff]
    %v43 = vld [vmem:[%s0 + $0x60] sm:$0xff]
    %v44 = vld [vmem:[%s0 + $0x68] sm:$0xff]
    %v45 = vld [vmem:[%s0 + $0x70] sm:$0xff]
    %v46 = vld [vmem:[%s0 + $0x78] sm:$0xff]
    %v47 = vld [vmem:[%s2] sm:$0xff]
    %vm48 = vcmask 64512
    %v50 = vsel %vm48, %v31, 0
    %v53 = vsel %vm48, %v32, 0
    %v56 = vsel %vm48, %v33, 0
    %v59 = vsel %vm48, %v34, 0
    %v62 = vsel %vm48, %v35, 0
    %v65 = vsel %vm48, %v36, 0
    %v68 = vsel %vm48, %v37, 0
    %v71 = vsel %vm48, %v38, 0
    %v74 = vsel %vm48, %v39, 0
    %v77 = vsel %vm48, %v40, 0
    %v80 = vsel %vm48, %v41, 0
    %v83 = vsel %vm48, %v42, 0
    %v86 = vsel %vm48, %v43, 0
    %v89 = vsel %vm48, %v44, 0
    %v92 = vsel %vm48, %v45, 0
    %v95 = vsel %vm48, %v46, 0
    %97 = vmatpush.msra.mxu0 0.0
    %98 = vmatpush.msra.mxu0 0.0
    %99 = vmatpush.msra.mxu0 0.0
    %100 = vmatpush.msra.mxu0 0.0
    %101 = vmatpush.msra.mxu0 0.0
    %102 = vmatpush.msra.mxu0 0.0
    %103 = vmatpush.msra.mxu0 0.0
    %104 = vmatpush.msra.mxu0 0.0
    %105 = vmatpush.msra.mxu0 0.0
    %106 = vmatpush.msra.mxu0 0.0
    %107 = vmatpush.msra.mxu0 0.0
    %108 = vmatpush.msra.mxu0 0.0
    %109 = vmatpush.msra.mxu0 0.0
    %110 = vmatpush.msra.mxu0 0.0
    %111 = vmatpush.msra.mxu0 0.0
    %112 = vmatpush.msra.mxu0 %v47
    %113 = vmatmul.f32.gmra.mxu0 %v50
    %v114 = vpop.f32.mrf.mxu0
    %v115 = vadd.f32 0.0, %v114
    %116 = vmatmul.f32.gmra.mxu0 %v53
    %v117 = vpop.f32.mrf.mxu0
    %v118 = vadd.f32 0.0, %v117
    %119 = vmatmul.f32.gmra.mxu0 %v56
    %v120 = vpop.f32.mrf.mxu0
    %v121 = vadd.f32 0.0, %v120
    %122 = vmatmul.f32.gmra.mxu0 %v59
    %v123 = vpop.f32.mrf.mxu0
    %v124 = vadd.f32 0.0, %v123
    %125 = vmatmul.f32.gmra.mxu0 %v62
    %v126 = vpop.f32.mrf.mxu0
    %v127 = vadd.f32 0.0, %v126
    %128 = vmatmul.f32.gmra.mxu0 %v65
    %v129 = vpop.f32.mrf.mxu0
    %v130 = vadd.f32 0.0, %v129
    %131 = vmatmul.f32.gmra.mxu0 %v68
    %v132 = vpop.f32.mrf.mxu0
    %v133 = vadd.f32 0.0, %v132
    %134 = vmatmul.f32.gmra.mxu0 %v71
    %v135 = vpop.f32.mrf.mxu0
    %v136 = vadd.f32 0.0, %v135
    %137 = vmatmul.f32.gmra.mxu0 %v74
    %v138 = vpop.f32.mrf.mxu0
    %v139 = vadd.f32 0.0, %v138
    %140 = vmatmul.f32.gmra.mxu0 %v77
    %v141 = vpop.f32.mrf.mxu0
    %v142 = vadd.f32 0.0, %v141
    %143 = vmatmul.f32.gmra.mxu0 %v80
    %v144 = vpop.f32.mrf.mxu0
    %v145 = vadd.f32 0.0, %v144
    %146 = vmatmul.f32.gmra.mxu0 %v83
    %v147 = vpop.f32.mrf.mxu0
    %v148 = vadd.f32 0.0, %v147
    %149 = vmatmul.f32.gmra.mxu0 %v86
    %v150 = vpop.f32.mrf.mxu0
    %v151 = vadd.f32 0.0, %v150
    %152 = vmatmul.f32.gmra.mxu0 %v89
    %v153 = vpop.f32.mrf.mxu0
    %v154 = vadd.f32 0.0, %v153
    %155 = vmatmul.f32.gmra.mxu0 %v92
    %v156 = vpop.f32.mrf.mxu0
    %v157 = vadd.f32 0.0, %v156
    %158 = vmatmul.f32.gmra.mxu0 %v95
    %v159 = vpop.f32.mrf.mxu0
    %v160 = vadd.f32 0.0, %v159
    %161 = vdwg.mxu0
    %v162 = vld [vmem:[%s2 + $0x8] sm:$0x1]
    %v163 = vld [vmem:[%s2 + $0x9] sm:$0x1]
    %vm164 = vcmask 261120
    %v165 = vsel %vm164, %v115, 0.0
    %v166 = vrot.slane %v165, 4
    %v167 = vadd.f32 %v165, %v166
    %v168 = vrot.slane %v167, 2
    %v169 = vadd.f32 %v167, %v168
    %v170 = vrot.slane %v169, 1
    %v171 = vadd.f32 %v169, %v170
    %v172 = vsel %vm164, %v118, 0.0
    %v173 = vrot.slane %v172, 4
    %v174 = vadd.f32 %v172, %v173
    %v175 = vrot.slane %v174, 2
    %v176 = vadd.f32 %v174, %v175
    %v177 = vrot.slane %v176, 1
    %v178 = vadd.f32 %v176, %v177
    %v179 = vsel %vm164, %v121, 0.0
    %v180 = vrot.slane %v179, 4
    %v181 = vadd.f32 %v179, %v180
    %v182 = vrot.slane %v181, 2
    %v183 = vadd.f32 %v181, %v182
    %v184 = vrot.slane %v183, 1
    %v185 = vadd.f32 %v183, %v184
    %v186 = vsel %vm164, %v124, 0.0
    %v187 = vrot.slane %v186, 4
    %v188 = vadd.f32 %v186, %v187
    %v189 = vrot.slane %v188, 2
    %v190 = vadd.f32 %v188, %v189
    %v191 = vrot.slane %v190, 1
    %v192 = vadd.f32 %v190, %v191
    %v193 = vsel %vm164, %v127, 0.0
    %v194 = vrot.slane %v193, 4
    %v195 = vadd.f32 %v193, %v194
    %v196 = vrot.slane %v195, 2
    %v197 = vadd.f32 %v195, %v196
    %v198 = vrot.slane %v197, 1
    %v199 = vadd.f32 %v197, %v198
    %v200 = vsel %vm164, %v130, 0.0
    %v201 = vrot.slane %v200, 4
    %v202 = vadd.f32 %v200, %v201
    %v203 = vrot.slane %v202, 2
    %v204 = vadd.f32 %v202, %v203
    %v205 = vrot.slane %v204, 1
    %v206 = vadd.f32 %v204, %v205
    %v207 = vsel %vm164, %v133, 0.0
    %v208 = vrot.slane %v207, 4
    %v209 = vadd.f32 %v207, %v208
    %v210 = vrot.slane %v209, 2
    %v211 = vadd.f32 %v209, %v210
    %v212 = vrot.slane %v211, 1
    %v213 = vadd.f32 %v211, %v212
    %v214 = vsel %vm164, %v136, 0.0
    %v215 = vrot.slane %v214, 4
    %v216 = vadd.f32 %v214, %v215
    %v217 = vrot.slane %v216, 2
    %v218 = vadd.f32 %v216, %v217
    %v219 = vrot.slane %v218, 1
    %v220 = vadd.f32 %v218, %v219
    %v221 = vsel %vm164, %v139, 0.0
    %v222 = vrot.slane %v221, 4
    %v223 = vadd.f32 %v221, %v222
    %v224 = vrot.slane %v223, 2
    %v225 = vadd.f32 %v223, %v224
    %v226 = vrot.slane %v225, 1
    %v227 = vadd.f32 %v225, %v226
    %v228 = vsel %vm164, %v142, 0.0
    %v229 = vrot.slane %v228, 4
    %v230 = vadd.f32 %v228, %v229
    %v231 = vrot.slane %v230, 2
    %v232 = vadd.f32 %v230, %v231
    %v233 = vrot.slane %v232, 1
    %v234 = vadd.f32 %v232, %v233
    %v235 = vsel %vm164, %v145, 0.0
    %v236 = vrot.slane %v235, 4
    %v237 = vadd.f32 %v235, %v236
    %v238 = vrot.slane %v237, 2
    %v239 = vadd.f32 %v237, %v238
    %v240 = vrot.slane %v239, 1
    %v241 = vadd.f32 %v239, %v240
    %v242 = vsel %vm164, %v148, 0.0
    %v243 = vrot.slane %v242, 4
    %v244 = vadd.f32 %v242, %v243
    %v245 = vrot.slane %v244, 2
    %v246 = vadd.f32 %v244, %v245
    %v247 = vrot.slane %v246, 1
    %v248 = vadd.f32 %v246, %v247
    %v249 = vsel %vm164, %v151, 0.0
    %v250 = vrot.slane %v249, 4
    %v251 = vadd.f32 %v249, %v250
    %v252 = vrot.slane %v251, 2
    %v253 = vadd.f32 %v251, %v252
    %v254 = vrot.slane %v253, 1
    %v255 = vadd.f32 %v253, %v254
    %v256 = vsel %vm164, %v154, 0.0
    %v257 = vrot.slane %v256, 4
    %v258 = vadd.f32 %v256, %v257
    %v259 = vrot.slane %v258, 2
    %v260 = vadd.f32 %v258, %v259
    %v261 = vrot.slane %v260, 1
    %v262 = vadd.f32 %v260, %v261
    %v263 = vsel %vm164, %v157, 0.0
    %v264 = vrot.slane %v263, 4
    %v265 = vadd.f32 %v263, %v264
    %v266 = vrot.slane %v265, 2
    %v267 = vadd.f32 %v265, %v266
    %v268 = vrot.slane %v267, 1
    %v269 = vadd.f32 %v267, %v268
    %v270 = vsel %vm164, %v160, 0.0
    %v271 = vrot.slane %v270, 4
    %v272 = vadd.f32 %v270, %v271
    %v273 = vrot.slane %v272, 2
    %v274 = vadd.f32 %v272, %v273
    %v275 = vrot.slane %v274, 1
    %v276 = vadd.f32 %v274, %v275
    %v277 = vrcp.pop 8.0
    %v278 = vmul.f32 8.0, %v277
    %v279 = vsub.f32 1.0, %v278
    %v280 = vmul.f32 %v277, %v279
    %v281 = vadd.f32 %v277, %v280
    %vm282 = vweird.f32 %v277
    %v283 = vsel %vm282, %v277, %v281
    %v284 = vmul.f32 %v171, %v283
    %v285 = vmul.f32 %v178, %v283
    %v286 = vmul.f32 %v185, %v283
    %v287 = vmul.f32 %v192, %v283
    %v288 = vmul.f32 %v199, %v283
    %v289 = vmul.f32 %v206, %v283
    %v290 = vmul.f32 %v213, %v283
    %v291 = vmul.f32 %v220, %v283
    %v292 = vmul.f32 %v227, %v283
    %v293 = vmul.f32 %v234, %v283
    %v294 = vmul.f32 %v241, %v283
    %v295 = vmul.f32 %v248, %v283
    %v296 = vmul.f32 %v255, %v283
    %v297 = vmul.f32 %v262, %v283
    %v298 = vmul.f32 %v269, %v283
    %v299 = vmul.f32 %v276, %v283
    %v300 = vsub.f32 %v115, %v284
    %v301 = vsub.f32 %v118, %v285
    %v302 = vsub.f32 %v121, %v286
    %v303 = vsub.f32 %v124, %v287
    %v304 = vsub.f32 %v127, %v288
    %v305 = vsub.f32 %v130, %v289
    %v306 = vsub.f32 %v133, %v290
    %v307 = vsub.f32 %v136, %v291
    %v308 = vsub.f32 %v139, %v292
    %v309 = vsub.f32 %v142, %v293
    %v310 = vsub.f32 %v145, %v294
    %v311 = vsub.f32 %v148, %v295
    %v312 = vsub.f32 %v151, %v296
    %v313 = vsub.f32 %v154, %v297
    %v314 = vsub.f32 %v157, %v298
    %v315 = vsub.f32 %v160, %v299
    %v316 = vmul.f32 %v300, %v300
    %v317 = vmul.f32 %v301, %v301
    %v318 = vmul.f32 %v302, %v302
    %v319 = vmul.f32 %v303, %v303
    %v320 = vmul.f32 %v304, %v304
    %v321 = vmul.f32 %v305, %v305
    %v322 = vmul.f32 %v306, %v306
    %v323 = vmul.f32 %v307, %v307
    %v324 = vmul.f32 %v308, %v308
    %v325 = vmul.f32 %v309, %v309
    %v326 = vmul.f32 %v310, %v310
    %v327 = vmul.f32 %v311, %v311
    %v328 = vmul.f32 %v312, %v312
    %v329 = vmul.f32 %v313, %v313
    %v330 = vmul.f32 %v314, %v314
    %v331 = vmul.f32 %v315, %v315
    %v332 = vsel %vm164, %v316, 0.0
    %v333 = vrot.slane %v332, 4
    %v334 = vadd.f32 %v332, %v333
    %v335 = vrot.slane %v334, 2
    %v336 = vadd.f32 %v334, %v335
    %v337 = vrot.slane %v336, 1
    %v338 = vadd.f32 %v336, %v337
    %v339 = vsel %vm164, %v317, 0.0
    %v340 = vrot.slane %v339, 4
    %v341 = vadd.f32 %v339, %v340
    %v342 = vrot.slane %v341, 2
    %v343 = vadd.f32 %v341, %v342
    %v344 = vrot.slane %v343, 1
    %v345 = vadd.f32 %v343, %v344
    %v346 = vsel %vm164, %v318, 0.0
    %v347 = vrot.slane %v346, 4
    %v348 = vadd.f32 %v346, %v347
    %v349 = vrot.slane %v348, 2
    %v350 = vadd.f32 %v348, %v349
    %v351 = vrot.slane %v350, 1
    %v352 = vadd.f32 %v350, %v351
    %v353 = vsel %vm164, %v319, 0.0
    %v354 = vrot.slane %v353, 4
    %v355 = vadd.f32 %v353, %v354
    %v356 = vrot.slane %v355, 2
    %v357 = vadd.f32 %v355, %v356
    %v358 = vrot.slane %v357, 1
    %v359 = vadd.f32 %v357, %v358
    %v360 = vsel %vm164, %v320, 0.0
    %v361 = vrot.slane %v360, 4
    %v362 = vadd.f32 %v360, %v361
    %v363 = vrot.slane %v362, 2
    %v364 = vadd.f32 %v362, %v363
    %v365 = vrot.slane %v364, 1
    %v366 = vadd.f32 %v364, %v365
    %v367 = vsel %vm164, %v321, 0.0
    %v368 = vrot.slane %v367, 4
    %v369 = vadd.f32 %v367, %v368
    %v370 = vrot.slane %v369, 2
    %v371 = vadd.f32 %v369, %v370
    %v372 = vrot.slane %v371, 1
    %v373 = vadd.f32 %v371, %v372
    %v374 = vsel %vm164, %v322, 0.0
    %v375 = vrot.slane %v374, 4
    %v376 = vadd.f32 %v374, %v375
    %v377 = vrot.slane %v376, 2
    %v378 = vadd.f32 %v376, %v377
    %v379 = vrot.slane %v378, 1
    %v380 = vadd.f32 %v378, %v379
    %v381 = vsel %vm164, %v323, 0.0
    %v382 = vrot.slane %v381, 4
    %v383 = vadd.f32 %v381, %v382
    %v384 = vrot.slane %v383, 2
    %v385 = vadd.f32 %v383, %v384
    %v386 = vrot.slane %v385, 1
    %v387 = vadd.f32 %v385, %v386
    %v388 = vsel %vm164, %v324, 0.0
    %v389 = vrot.slane %v388, 4
    %v390 = vadd.f32 %v388, %v389
    %v391 = vrot.slane %v390, 2
    %v392 = vadd.f32 %v390, %v391
    %v393 = vrot.slane %v392, 1
    %v394 = vadd.f32 %v392, %v393
    %v395 = vsel %vm164, %v325, 0.0
    %v396 = vrot.slane %v395, 4
    %v397 = vadd.f32 %v395, %v396
    %v398 = vrot.slane %v397, 2
    %v399 = vadd.f32 %v397, %v398
    %v400 = vrot.slane %v399, 1
    %v401 = vadd.f32 %v399, %v400
    %v402 = vsel %vm164, %v326, 0.0
    %v403 = vrot.slane %v402, 4
    %v404 = vadd.f32 %v402, %v403
    %v405 = vrot.slane %v404, 2
    %v406 = vadd.f32 %v404, %v405
    %v407 = vrot.slane %v406, 1
    %v408 = vadd.f32 %v406, %v407
    %v409 = vsel %vm164, %v327, 0.0
    %v410 = vrot.slane %v409, 4
    %v411 = vadd.f32 %v409, %v410
    %v412 = vrot.slane %v411, 2
    %v413 = vadd.f32 %v411, %v412
    %v414 = vrot.slane %v413, 1
    %v415 = vadd.f32 %v413, %v414
    %v416 = vsel %vm164, %v328, 0.0
    %v417 = vrot.slane %v416, 4
    %v418 = vadd.f32 %v416, %v417
    %v419 = vrot.slane %v418, 2
    %v420 = vadd.f32 %v418, %v419
    %v421 = vrot.slane %v420, 1
    %v422 = vadd.f32 %v420, %v421
    %v423 = vsel %vm164, %v329, 0.0
    %v424 = vrot.slane %v423, 4
    %v425 = vadd.f32 %v423, %v424
    %v426 = vrot.slane %v425, 2
    %v427 = vadd.f32 %v425, %v426
    %v428 = vrot.slane %v427, 1
    %v429 = vadd.f32 %v427, %v428
    %v430 = vsel %vm164, %v330, 0.0
    %v431 = vrot.slane %v430, 4
    %v432 = vadd.f32 %v430, %v431
    %v433 = vrot.slane %v432, 2
    %v434 = vadd.f32 %v432, %v433
    %v435 = vrot.slane %v434, 1
    %v436 = vadd.f32 %v434, %v435
    %v437 = vsel %vm164, %v331, 0.0
    %v438 = vrot.slane %v437, 4
    %v439 = vadd.f32 %v437, %v438
    %v440 = vrot.slane %v439, 2
    %v441 = vadd.f32 %v439, %v440
    %v442 = vrot.slane %v441, 1
    %v443 = vadd.f32 %v441, %v442
    %v444 = vmul.f32 %v338, %v283
    %v445 = vmul.f32 %v345, %v283
    %v446 = vmul.f32 %v352, %v283
    %v447 = vmul.f32 %v359, %v283
    %v448 = vmul.f32 %v366, %v283
    %v449 = vmul.f32 %v373, %v283
    %v450 = vmul.f32 %v380, %v283
    %v451 = vmul.f32 %v387, %v283
    %v452 = vmul.f32 %v394, %v283
    %v453 = vmul.f32 %v401, %v283
    %v454 = vmul.f32 %v408, %v283
    %v455 = vmul.f32 %v415, %v283
    %v456 = vmul.f32 %v422, %v283
    %v457 = vmul.f32 %v429, %v283
    %v458 = vmul.f32 %v436, %v283
    %v459 = vmul.f32 %v443, %v283
    %v460 = vadd.f32 %v444, 1e-05
    %v461 = vadd.f32 %v445, 1e-05
    %v462 = vadd.f32 %v446, 1e-05
    %v463 = vadd.f32 %v447, 1e-05
    %v464 = vadd.f32 %v448, 1e-05
    %v465 = vadd.f32 %v449, 1e-05
    %v466 = vadd.f32 %v450, 1e-05
    %v467 = vadd.f32 %v451, 1e-05
    %v468 = vadd.f32 %v452, 1e-05
    %v469 = vadd.f32 %v453, 1e-05
    %v470 = vadd.f32 %v454, 1e-05
    %v471 = vadd.f32 %v455, 1e-05
    %v472 = vadd.f32 %v456, 1e-05
    %v473 = vadd.f32 %v457, 1e-05
    %v474 = vadd.f32 %v458, 1e-05
    %v475 = vadd.f32 %v459, 1e-05
    %v476 = vrsqrt.pop %v460
    %v477 = vmul.f32 %v476, %v460
    %v478 = vmul.f32 %v477, %v476
    %v479 = vmul.f32 0.5, %v478
    %v480 = vsub.f32 1.5, %v479
    %v481 = vmul.f32 %v476, %v480
    %vm482 = vweird.f32 %v460
    %vm483 = vweird.f32 %v476
    %vm484 = vmor %vm482, %vm483
    %v485 = vsel %vm484, %v476, %v481
    %v486 = vrsqrt.pop %v461
    %v487 = vmul.f32 %v486, %v461
    %v488 = vmul.f32 %v487, %v486
    %v489 = vmul.f32 0.5, %v488
    %v490 = vsub.f32 1.5, %v489
    %v491 = vmul.f32 %v486, %v490
    %vm492 = vweird.f32 %v461
    %vm493 = vweird.f32 %v486
    %vm494 = vmor %vm492, %vm493
    %v495 = vsel %vm494, %v486, %v491
    %v496 = vrsqrt.pop %v462
    %v497 = vmul.f32 %v496, %v462
    %v498 = vmul.f32 %v497, %v496
    %v499 = vmul.f32 0.5, %v498
    %v500 = vsub.f32 1.5, %v499
    %v501 = vmul.f32 %v496, %v500
    %vm502 = vweird.f32 %v462
    %vm503 = vweird.f32 %v496
    %vm504 = vmor %vm502, %vm503
    %v505 = vsel %vm504, %v496, %v501
    %v506 = vrsqrt.pop %v463
    %v507 = vmul.f32 %v506, %v463
    %v508 = vmul.f32 %v507, %v506
    %v509 = vmul.f32 0.5, %v508
    %v510 = vsub.f32 1.5, %v509
    %v511 = vmul.f32 %v506, %v510
    %vm512 = vweird.f32 %v463
    %vm513 = vweird.f32 %v506
    %vm514 = vmor %vm512, %vm513
    %v515 = vsel %vm514, %v506, %v511
    %v516 = vrsqrt.pop %v464
    %v517 = vmul.f32 %v516, %v464
    %v518 = vmul.f32 %v517, %v516
    %v519 = vmul.f32 0.5, %v518
    %v520 = vsub.f32 1.5, %v519
    %v521 = vmul.f32 %v516, %v520
    %vm522 = vweird.f32 %v464
    %vm523 = vweird.f32 %v516
    %vm524 = vmor %vm522, %vm523
    %v525 = vsel %vm524, %v516, %v521
    %v526 = vrsqrt.pop %v465
    %v527 = vmul.f32 %v526, %v465
    %v528 = vmul.f32 %v527, %v526
    %v529 = vmul.f32 0.5, %v528
    %v530 = vsub.f32 1.5, %v529
    %v531 = vmul.f32 %v526, %v530
    %vm532 = vweird.f32 %v465
    %vm533 = vweird.f32 %v526
    %vm534 = vmor %vm532, %vm533
    %v535 = vsel %vm534, %v526, %v531
    %v536 = vrsqrt.pop %v466
    %v537 = vmul.f32 %v536, %v466
    %v538 = vmul.f32 %v537, %v536
    %v539 = vmul.f32 0.5, %v538
    %v540 = vsub.f32 1.5, %v539
    %v541 = vmul.f32 %v536, %v540
    %vm542 = vweird.f32 %v466
    %vm543 = vweird.f32 %v536
    %vm544 = vmor %vm542, %vm543
    %v545 = vsel %vm544, %v536, %v541
    %v546 = vrsqrt.pop %v467
    %v547 = vmul.f32 %v546, %v467
    %v548 = vmul.f32 %v547, %v546
    %v549 = vmul.f32 0.5, %v548
    %v550 = vsub.f32 1.5, %v549
    %v551 = vmul.f32 %v546, %v550
    %vm552 = vweird.f32 %v467
    %vm553 = vweird.f32 %v546
    %vm554 = vmor %vm552, %vm553
    %v555 = vsel %vm554, %v546, %v551
    %v556 = vrsqrt.pop %v468
    %v557 = vmul.f32 %v556, %v468
    %v558 = vmul.f32 %v557, %v556
    %v559 = vmul.f32 0.5, %v558
    %v560 = vsub.f32 1.5, %v559
    %v561 = vmul.f32 %v556, %v560
    %vm562 = vweird.f32 %v468
    %vm563 = vweird.f32 %v556
    %vm564 = vmor %vm562, %vm563
    %v565 = vsel %vm564, %v556, %v561
    %v566 = vrsqrt.pop %v469
    %v567 = vmul.f32 %v566, %v469
    %v568 = vmul.f32 %v567, %v566
    %v569 = vmul.f32 0.5, %v568
    %v570 = vsub.f32 1.5, %v569
    %v571 = vmul.f32 %v566, %v570
    %vm572 = vweird.f32 %v469
    %vm573 = vweird.f32 %v566
    %vm574 = vmor %vm572, %vm573
    %v575 = vsel %vm574, %v566, %v571
    %v576 = vrsqrt.pop %v470
    %v577 = vmul.f32 %v576, %v470
    %v578 = vmul.f32 %v577, %v576
    %v579 = vmul.f32 0.5, %v578
    %v580 = vsub.f32 1.5, %v579
    %v581 = vmul.f32 %v576, %v580
    %vm582 = vweird.f32 %v470
    %vm583 = vweird.f32 %v576
    %vm584 = vmor %vm582, %vm583
    %v585 = vsel %vm584, %v576, %v581
    %v586 = vrsqrt.pop %v471
    %v587 = vmul.f32 %v586, %v471
    %v588 = vmul.f32 %v587, %v586
    %v589 = vmul.f32 0.5, %v588
    %v590 = vsub.f32 1.5, %v589
    %v591 = vmul.f32 %v586, %v590
    %vm592 = vweird.f32 %v471
    %vm593 = vweird.f32 %v586
    %vm594 = vmor %vm592, %vm593
    %v595 = vsel %vm594, %v586, %v591
    %v596 = vrsqrt.pop %v472
    %v597 = vmul.f32 %v596, %v472
    %v598 = vmul.f32 %v597, %v596
    %v599 = vmul.f32 0.5, %v598
    %v600 = vsub.f32 1.5, %v599
    %v601 = vmul.f32 %v596, %v600
    %vm602 = vweird.f32 %v472
    %vm603 = vweird.f32 %v596
    %vm604 = vmor %vm602, %vm603
    %v605 = vsel %vm604, %v596, %v601
    %v606 = vrsqrt.pop %v473
    %v607 = vmul.f32 %v606, %v473
    %v608 = vmul.f32 %v607, %v606
    %v609 = vmul.f32 0.5, %v608
    %v610 = vsub.f32 1.5, %v609
    %v611 = vmul.f32 %v606, %v610
    %vm612 = vweird.f32 %v473
    %vm613 = vweird.f32 %v606
    %vm614 = vmor %vm612, %vm613
    %v615 = vsel %vm614, %v606, %v611
    %v616 = vrsqrt.pop %v474
    %v617 = vmul.f32 %v616, %v474
    %v618 = vmul.f32 %v617, %v616
    %v619 = vmul.f32 0.5, %v618
    %v620 = vsub.f32 1.5, %v619
    %v621 = vmul.f32 %v616, %v620
    %vm622 = vweird.f32 %v474
    %vm623 = vweird.f32 %v616
    %vm624 = vmor %vm622, %vm623
    %v625 = vsel %vm624, %v616, %v621
    %v626 = vrsqrt.pop %v475
    %v627 = vmul.f32 %v626, %v475
    %v628 = vmul.f32 %v627, %v626
    %v629 = vmul.f32 0.5, %v628
    %v630 = vsub.f32 1.5, %v629
    %v631 = vmul.f32 %v626, %v630
    %vm632 = vweird.f32 %v475
    %vm633 = vweird.f32 %v626
    %vm634 = vmor %vm632, %vm633
    %v635 = vsel %vm634, %v626, %v631
    %v636 = vmul.f32 %v162, %v485
    %v637 = vmul.f32 %v162, %v495
    %v638 = vmul.f32 %v162, %v505
    %v639 = vmul.f32 %v162, %v515
    %v640 = vmul.f32 %v162, %v525
    %v641 = vmul.f32 %v162, %v535
    %v642 = vmul.f32 %v162, %v545
    %v643 = vmul.f32 %v162, %v555
    %v644 = vmul.f32 %v162, %v565
    %v645 = vmul.f32 %v162, %v575
    %v646 = vmul.f32 %v162, %v585
    %v647 = vmul.f32 %v162, %v595
    %v648 = vmul.f32 %v162, %v605
    %v649 = vmul.f32 %v162, %v615
    %v650 = vmul.f32 %v162, %v625
    %v651 = vmul.f32 %v162, %v635
    %v652 = vperm.slane %v636, 0
    %v653 = vperm.slane %v637, 0
    %v654 = vperm.slane %v638, 0
    %v655 = vperm.slane %v639, 0
    %v656 = vperm.slane %v640, 0
    %v657 = vperm.slane %v641, 0
    %v658 = vperm.slane %v642, 0
    %v659 = vperm.slane %v643, 0
    %v660 = vperm.slane %v644, 0
    %v661 = vperm.slane %v645, 0
    %v662 = vperm.slane %v646, 0
    %v663 = vperm.slane %v647, 0
    %v664 = vperm.slane %v648, 0
    %v665 = vperm.slane %v649, 0
    %v666 = vperm.slane %v650, 0
    %v667 = vperm.slane %v651, 0
    %v668 = vmul.f32 %v300, %v652
    %v669 = vmul.f32 %v301, %v653
    %v670 = vmul.f32 %v302, %v654
    %v671 = vmul.f32 %v303, %v655
    %v672 = vmul.f32 %v304, %v656
    %v673 = vmul.f32 %v305, %v657
    %v674 = vmul.f32 %v306, %v658
    %v675 = vmul.f32 %v307, %v659
    %v676 = vmul.f32 %v308, %v660
    %v677 = vmul.f32 %v309, %v661
    %v678 = vmul.f32 %v310, %v662
    %v679 = vmul.f32 %v311, %v663
    %v680 = vmul.f32 %v312, %v664
    %v681 = vmul.f32 %v313, %v665
    %v682 = vmul.f32 %v314, %v666
    %v683 = vmul.f32 %v315, %v667
    %v684 = vperm.slane %v163, 0
    %v685 = vadd.f32 %v668, %v684
    %v686 = vadd.f32 %v669, %v684
    %v687 = vadd.f32 %v670, %v684
    %v688 = vadd.f32 %v671, %v684
    %v689 = vadd.f32 %v672, %v684
    %v690 = vadd.f32 %v673, %v684
    %v691 = vadd.f32 %v674, %v684
    %v692 = vadd.f32 %v675, %v684
    %v693 = vadd.f32 %v676, %v684
    %v694 = vadd.f32 %v677, %v684
    %v695 = vadd.f32 %v678, %v684
    %v696 = vadd.f32 %v679, %v684
    %v697 = vadd.f32 %v680, %v684
    %v698 = vadd.f32 %v681, %v684
    %v699 = vadd.f32 %v682, %v684
    %v700 = vadd.f32 %v683, %v684
    %vm701 = vcmp.ge.f32.partialorder %v685, 0.0
    %vm702 = vcmp.ge.f32.partialorder %v686, 0.0
    %vm703 = vcmp.ge.f32.partialorder %v687, 0.0
    %vm704 = vcmp.ge.f32.partialorder %v688, 0.0
    %vm705 = vcmp.ge.f32.partialorder %v689, 0.0
    %vm706 = vcmp.ge.f32.partialorder %v690, 0.0
    %vm707 = vcmp.ge.f32.partialorder %v691, 0.0
    %vm708 = vcmp.ge.f32.partialorder %v692, 0.0
    %vm709 = vcmp.ge.f32.partialorder %v693, 0.0
    %vm710 = vcmp.ge.f32.partialorder %v694, 0.0
    %vm711 = vcmp.ge.f32.partialorder %v695, 0.0
    %vm712 = vcmp.ge.f32.partialorder %v696, 0.0
    %vm713 = vcmp.ge.f32.partialorder %v697, 0.0
    %vm714 = vcmp.ge.f32.partialorder %v698, 0.0
    %vm715 = vcmp.ge.f32.partialorder %v699, 0.0
    %vm716 = vcmp.ge.f32.partialorder %v700, 0.0
    %v717 = vmul.f32 %v685, 0.01
    %v718 = vmul.f32 %v686, 0.01
    %v719 = vmul.f32 %v687, 0.01
    %v720 = vmul.f32 %v688, 0.01
    %v721 = vmul.f32 %v689, 0.01
    %v722 = vmul.f32 %v690, 0.01
    %v723 = vmul.f32 %v691, 0.01
    %v724 = vmul.f32 %v692, 0.01
    %v725 = vmul.f32 %v693, 0.01
    %v726 = vmul.f32 %v694, 0.01
    %v727 = vmul.f32 %v695, 0.01
    %v728 = vmul.f32 %v696, 0.01
    %v729 = vmul.f32 %v697, 0.01
    %v730 = vmul.f32 %v698, 0.01
    %v731 = vmul.f32 %v699, 0.01
    %v732 = vmul.f32 %v700, 0.01
    %v733 = vsel %vm701, %v685, %v717
    %v734 = vsel %vm702, %v686, %v718
    %v735 = vsel %vm703, %v687, %v719
    %v736 = vsel %vm704, %v688, %v720
    %v737 = vsel %vm705, %v689, %v721
    %v738 = vsel %vm706, %v690, %v722
    %v739 = vsel %vm707, %v691, %v723
    %v740 = vsel %vm708, %v692, %v724
    %v741 = vsel %vm709, %v693, %v725
    %v742 = vsel %vm710, %v694, %v726
    %v743 = vsel %vm711, %v695, %v727
    %v744 = vsel %vm712, %v696, %v728
    %v745 = vsel %vm713, %v697, %v729
    %v746 = vsel %vm714, %v698, %v730
    %v747 = vsel %vm715, %v699, %v731
    %v748 = vsel %vm716, %v700, %v732
    %v749 = vld [vmem:[%s2 + $0xa] sm:$0xff]
    %v750 = vld [vmem:[%s2 + $0x12] sm:$0xff]
    %v751 = vld [vmem:[%s2 + $0x1a] sm:$0xff]
    %v752 = vld [vmem:[%s2 + $0x22] sm:$0xff]
    %v753 = vld [vmem:[%s2 + $0x2e] sm:$0x1]
    %v754 = vperm.slane %v753, 0
    %v756 = vsel %vm164, %v733, 0
    %v759 = vsel %vm164, %v734, 0
    %v762 = vsel %vm164, %v735, 0
    %v765 = vsel %vm164, %v736, 0
    %v768 = vsel %vm164, %v737, 0
    %v771 = vsel %vm164, %v738, 0
    %v774 = vsel %vm164, %v739, 0
    %v777 = vsel %vm164, %v740, 0
    %v780 = vsel %vm164, %v741, 0
    %v783 = vsel %vm164, %v742, 0
    %v786 = vsel %vm164, %v743, 0
    %v789 = vsel %vm164, %v744, 0
    %v792 = vsel %vm164, %v745, 0
    %v795 = vsel %vm164, %v746, 0
    %v798 = vsel %vm164, %v747, 0
    %v801 = vsel %vm164, %v748, 0
    %803 = vmatpush.msra.mxu0 0.0
    %804 = vmatpush.msra.mxu0 0.0
    %805 = vmatpush.msra.mxu0 0.0
    %806 = vmatpush.msra.mxu0 0.0
    %807 = vmatpush.msra.mxu0 0.0
    %808 = vmatpush.msra.mxu0 0.0
    %809 = vmatpush.msra.mxu0 0.0
    %810 = vmatpush.msra.mxu0 0.0
    %811 = vmatpush.msra.mxu0 0.0
    %812 = vmatpush.msra.mxu0 0.0
    %813 = vmatpush.msra.mxu0 0.0
    %814 = vmatpush.msra.mxu0 0.0
    %815 = vmatpush.msra.mxu0 %v752
    %816 = vmatpush.msra.mxu0 %v751
    %817 = vmatpush.msra.mxu0 %v750
    %818 = vmatpush.msra.mxu0 %v749
    %819 = vmatmul.f32.gmra.mxu0 %v756
    %v820 = vpop.f32.mrf.mxu0
    %v821 = vadd.f32 %v754, %v820
    %822 = vmatmul.f32.gmra.mxu0 %v759
    %v823 = vpop.f32.mrf.mxu0
    %v824 = vadd.f32 %v754, %v823
    %825 = vmatmul.f32.gmra.mxu0 %v762
    %v826 = vpop.f32.mrf.mxu0
    %v827 = vadd.f32 %v754, %v826
    %828 = vmatmul.f32.gmra.mxu0 %v765
    %v829 = vpop.f32.mrf.mxu0
    %v830 = vadd.f32 %v754, %v829
    %831 = vmatmul.f32.gmra.mxu0 %v768
    %v832 = vpop.f32.mrf.mxu0
    %v833 = vadd.f32 %v754, %v832
    %834 = vmatmul.f32.gmra.mxu0 %v771
    %v835 = vpop.f32.mrf.mxu0
    %v836 = vadd.f32 %v754, %v835
    %837 = vmatmul.f32.gmra.mxu0 %v774
    %v838 = vpop.f32.mrf.mxu0
    %v839 = vadd.f32 %v754, %v838
    %840 = vmatmul.f32.gmra.mxu0 %v777
    %v841 = vpop.f32.mrf.mxu0
    %v842 = vadd.f32 %v754, %v841
    %843 = vmatmul.f32.gmra.mxu0 %v780
    %v844 = vpop.f32.mrf.mxu0
    %v845 = vadd.f32 %v754, %v844
    %846 = vmatmul.f32.gmra.mxu0 %v783
    %v847 = vpop.f32.mrf.mxu0
    %v848 = vadd.f32 %v754, %v847
    %849 = vmatmul.f32.gmra.mxu0 %v786
    %v850 = vpop.f32.mrf.mxu0
    %v851 = vadd.f32 %v754, %v850
    %852 = vmatmul.f32.gmra.mxu0 %v789
    %v853 = vpop.f32.mrf.mxu0
    %v854 = vadd.f32 %v754, %v853
    %855 = vmatmul.f32.gmra.mxu0 %v792
    %v856 = vpop.f32.mrf.mxu0
    %v857 = vadd.f32 %v754, %v856
    %858 = vmatmul.f32.gmra.mxu0 %v795
    %v859 = vpop.f32.mrf.mxu0
    %v860 = vadd.f32 %v754, %v859
    %861 = vmatmul.f32.gmra.mxu0 %v798
    %v862 = vpop.f32.mrf.mxu0
    %v863 = vadd.f32 %v754, %v862
    %864 = vmatmul.f32.gmra.mxu0 %v801
    %v865 = vpop.f32.mrf.mxu0
    %v866 = vadd.f32 %v754, %v865
    %867 = vdwg.mxu0
    %v868 = vld [vmem:[%s1] sm:$0xff]
    %v869 = vld [vmem:[%s1 + $0x8] sm:$0xff]
    %v870 = vld [vmem:[%s1 + $0x10] sm:$0xff]
    %v871 = vld [vmem:[%s1 + $0x18] sm:$0xff]
    %v872 = vld [vmem:[%s1 + $0x20] sm:$0xff]
    %v873 = vld [vmem:[%s1 + $0x28] sm:$0xff]
    %v874 = vld [vmem:[%s1 + $0x30] sm:$0xff]
    %v875 = vld [vmem:[%s1 + $0x38] sm:$0xff]
    %v876 = vld [vmem:[%s1 + $0x40] sm:$0xff]
    %v877 = vld [vmem:[%s1 + $0x48] sm:$0xff]
    %v878 = vld [vmem:[%s1 + $0x50] sm:$0xff]
    %v879 = vld [vmem:[%s1 + $0x58] sm:$0xff]
    %v880 = vld [vmem:[%s1 + $0x60] sm:$0xff]
    %v881 = vld [vmem:[%s1 + $0x68] sm:$0xff]
    %v882 = vld [vmem:[%s1 + $0x70] sm:$0xff]
    %v883 = vld [vmem:[%s1 + $0x78] sm:$0xff]
    %s884 = sld [smem:[#allocation2]]
    %v885 = vstv %s884
    %v886 = vmul.f32 %v868, %v885
    %v887 = vmul.f32 %v869, %v885
    %v888 = vmul.f32 %v870, %v885
    %v889 = vmul.f32 %v871, %v885
    %v890 = vmul.f32 %v872, %v885
    %v891 = vmul.f32 %v873, %v885
    %v892 = vmul.f32 %v874, %v885
    %v893 = vmul.f32 %v875, %v885
    %v894 = vmul.f32 %v876, %v885
    %v895 = vmul.f32 %v877, %v885
    %v896 = vmul.f32 %v878, %v885
    %v897 = vmul.f32 %v879, %v885
    %v898 = vmul.f32 %v880, %v885
    %v899 = vmul.f32 %v881, %v885
    %v900 = vmul.f32 %v882, %v885
    %v901 = vmul.f32 %v883, %v885
    %s902 = sld [smem:[#allocation2 + $0x1]]
    %v903 = vstv %s902
    %v904 = vmul.f32 %v868, %v903
    %v905 = vmul.f32 %v869, %v903
    %v906 = vmul.f32 %v870, %v903
    %v907 = vmul.f32 %v871, %v903
    %v908 = vmul.f32 %v872, %v903
    %v909 = vmul.f32 %v873, %v903
    %v910 = vmul.f32 %v874, %v903
    %v911 = vmul.f32 %v875, %v903
    %v912 = vmul.f32 %v876, %v903
    %v913 = vmul.f32 %v877, %v903
    %v914 = vmul.f32 %v878, %v903
    %v915 = vmul.f32 %v879, %v903
    %v916 = vmul.f32 %v880, %v903
    %v917 = vmul.f32 %v881, %v903
    %v918 = vmul.f32 %v882, %v903
    %v919 = vmul.f32 %v883, %v903
    %936 = vrot.lane.b32.xlu0 %v904, 127
    %v937 = vpop.permute.xlu0 %936
    %938 = vrot.lane.b32.xlu0 %v905, 127
    %v939 = vpop.permute.xlu0 %938
    %940 = vrot.lane.b32.xlu0 %v906, 127
    %v941 = vpop.permute.xlu0 %940
    %942 = vrot.lane.b32.xlu0 %v907, 127
    %v943 = vpop.permute.xlu0 %942
    %944 = vrot.lane.b32.xlu0 %v908, 127
    %v945 = vpop.permute.xlu0 %944
    %946 = vrot.lane.b32.xlu0 %v909, 127
    %v947 = vpop.permute.xlu0 %946
    %948 = vrot.lane.b32.xlu0 %v910, 127
    %v949 = vpop.permute.xlu0 %948
    %950 = vrot.lane.b32.xlu0 %v911, 127
    %v951 = vpop.permute.xlu0 %950
    %952 = vrot.lane.b32.xlu0 %v912, 127
    %v953 = vpop.permute.xlu0 %952
    %954 = vrot.lane.b32.xlu0 %v913, 127
    %v955 = vpop.permute.xlu0 %954
    %956 = vrot.lane.b32.xlu0 %v914, 127
    %v957 = vpop.permute.xlu0 %956
    %958 = vrot.lane.b32.xlu0 %v915, 127
    %v959 = vpop.permute.xlu0 %958
    %960 = vrot.lane.b32.xlu0 %v916, 127
    %v961 = vpop.permute.xlu0 %960
    %962 = vrot.lane.b32.xlu0 %v917, 127
    %v963 = vpop.permute.xlu0 %962
    %964 = vrot.lane.b32.xlu0 %v918, 127
    %v965 = vpop.permute.xlu0 %964
    %966 = vrot.lane.b32.xlu0 %v919, 127
    %v967 = vpop.permute.xlu0 %966
    %v984 = vadd.f32 %v886, %v937
    %v985 = vadd.f32 %v887, %v939
    %v986 = vadd.f32 %v888, %v941
    %v987 = vadd.f32 %v889, %v943
    %v988 = vadd.f32 %v890, %v945
    %v989 = vadd.f32 %v891, %v947
    %v990 = vadd.f32 %v892, %v949
    %v991 = vadd.f32 %v893, %v951
    %v992 = vadd.f32 %v894, %v953
    %v993 = vadd.f32 %v895, %v955
    %v994 = vadd.f32 %v896, %v957
    %v995 = vadd.f32 %v897, %v959
    %v996 = vadd.f32 %v898, %v961
    %v997 = vadd.f32 %v899, %v963
    %v998 = vadd.f32 %v900, %v965
    %v999 = vadd.f32 %v901, %v967
    %s1000 = sld [smem:[#allocation2 + $0x2]]
    %v1001 = vstv %s1000
    %v1002 = vmul.f32 %v868, %v1001
    %v1003 = vmul.f32 %v869, %v1001
    %v1004 = vmul.f32 %v870, %v1001
    %v1005 = vmul.f32 %v871, %v1001
    %v1006 = vmul.f32 %v872, %v1001
    %v1007 = vmul.f32 %v873, %v1001
    %v1008 = vmul.f32 %v874, %v1001
    %v1009 = vmul.f32 %v875, %v1001
    %v1010 = vmul.f32 %v876, %v1001
    %v1011 = vmul.f32 %v877, %v1001
    %v1012 = vmul.f32 %v878, %v1001
    %v1013 = vmul.f32 %v879, %v1001
    %v1014 = vmul.f32 %v880, %v1001
    %v1015 = vmul.f32 %v881, %v1001
    %v1016 = vmul.f32 %v882, %v1001
    %v1017 = vmul.f32 %v883, %v1001
    %1034 = vrot.lane.b32.xlu0 %v1002, 126
    %v1035 = vpop.permute.xlu0 %1034
    %1036 = vrot.lane.b32.xlu0 %v1003, 126
    %v1037 = vpop.permute.xlu0 %1036
    %1038 = vrot.lane.b32.xlu0 %v1004, 126
    %v1039 = vpop.permute.xlu0 %1038
    %1040 = vrot.lane.b32.xlu0 %v1005, 126
    %v1041 = vpop.permute.xlu0 %1040
    %1042 = vrot.lane.b32.xlu0 %v1006, 126
    %v1043 = vpop.permute.xlu0 %1042
    %1044 = vrot.lane.b32.xlu0 %v1007, 126
    %v1045 = vpop.permute.xlu0 %1044
    %1046 = vrot.lane.b32.xlu0 %v1008, 126
    %v1047 = vpop.permute.xlu0 %1046
    %1048 = vrot.lane.b32.xlu0 %v1009, 126
    %v1049 = vpop.permute.xlu0 %1048
    %1050 = vrot.lane.b32.xlu0 %v1010, 126
    %v1051 = vpop.permute.xlu0 %1050
    %1052 = vrot.lane.b32.xlu0 %v1011, 126
    %v1053 = vpop.permute.xlu0 %1052
    %1054 = vrot.lane.b32.xlu0 %v1012, 126
    %v1055 = vpop.permute.xlu0 %1054
    %1056 = vrot.lane.b32.xlu0 %v1013, 126
    %v1057 = vpop.permute.xlu0 %1056
    %1058 = vrot.lane.b32.xlu0 %v1014, 126
    %v1059 = vpop.permute.xlu0 %1058
    %1060 = vrot.lane.b32.xlu0 %v1015, 126
    %v1061 = vpop.permute.xlu0 %1060
    %1062 = vrot.lane.b32.xlu0 %v1016, 126
    %v1063 = vpop.permute.xlu0 %1062
    %1064 = vrot.lane.b32.xlu0 %v1017, 126
    %v1065 = vpop.permute.xlu0 %1064
    %v1082 = vadd.f32 %v984, %v1035
    %v1083 = vadd.f32 %v985, %v1037
    %v1084 = vadd.f32 %v986, %v1039
    %v1085 = vadd.f32 %v987, %v1041
    %v1086 = vadd.f32 %v988, %v1043
    %v1087 = vadd.f32 %v989, %v1045
    %v1088 = vadd.f32 %v990, %v1047
    %v1089 = vadd.f32 %v991, %v1049
    %v1090 = vadd.f32 %v992, %v1051
    %v1091 = vadd.f32 %v993, %v1053
    %v1092 = vadd.f32 %v994, %v1055
    %v1093 = vadd.f32 %v995, %v1057
    %v1094 = vadd.f32 %v996, %v1059
    %v1095 = vadd.f32 %v997, %v1061
    %v1096 = vadd.f32 %v998, %v1063
    %v1097 = vadd.f32 %v999, %v1065
    %vm1098 = vcmask 113664
    %v1099 = vsel %vm1098, %v1082, -inf
    %1100 = vmax.xlane.f32.xlu0 %v1099
    %v1101 = vpop.xlane.xlu0 %1100
    %v1102 = vsel %vm1098, %v1083, -inf
    %1103 = vmax.xlane.f32.xlu0 %v1102
    %v1104 = vpop.xlane.xlu0 %1103
    %v1105 = vsel %vm1098, %v1084, -inf
    %1106 = vmax.xlane.f32.xlu0 %v1105
    %v1107 = vpop.xlane.xlu0 %1106
    %v1108 = vsel %vm1098, %v1085, -inf
    %1109 = vmax.xlane.f32.xlu0 %v1108
    %v1110 = vpop.xlane.xlu0 %1109
    %v1111 = vsel %vm1098, %v1086, -inf
    %1112 = vmax.xlane.f32.xlu0 %v1111
    %v1113 = vpop.xlane.xlu0 %1112
    %v1114 = vsel %vm1098, %v1087, -inf
    %1115 = vmax.xlane.f32.xlu0 %v1114
    %v1116 = vpop.xlane.xlu0 %1115
    %v1117 = vsel %vm1098, %v1088, -inf
    %1118 = vmax.xlane.f32.xlu0 %v1117
    %v1119 = vpop.xlane.xlu0 %1118
    %v1120 = vsel %vm1098, %v1089, -inf
    %1121 = vmax.xlane.f32.xlu0 %v1120
    %v1122 = vpop.xlane.xlu0 %1121
    %v1123 = vsel %vm1098, %v1090, -inf
    %1124 = vmax.xlane.f32.xlu0 %v1123
    %v1125 = vpop.xlane.xlu0 %1124
    %v1126 = vsel %vm1098, %v1091, -inf
    %1127 = vmax.xlane.f32.xlu0 %v1126
    %v1128 = vpop.xlane.xlu0 %1127
    %v1129 = vsel %vm1098, %v1092, -inf
    %1130 = vmax.xlane.f32.xlu0 %v1129
    %v1131 = vpop.xlane.xlu0 %1130
    %v1132 = vsel %vm1098, %v1093, -inf
    %1133 = vmax.xlane.f32.xlu0 %v1132
    %v1134 = vpop.xlane.xlu0 %1133
    %v1135 = vsel %vm1098, %v1094, -inf
    %1136 = vmax.xlane.f32.xlu0 %v1135
    %v1137 = vpop.xlane.xlu0 %1136
    %v1138 = vsel %vm1098, %v1095, -inf
    %1139 = vmax.xlane.f32.xlu0 %v1138
    %v1140 = vpop.xlane.xlu0 %1139
    %v1141 = vsel %vm1098, %v1096, -inf
    %1142 = vmax.xlane.f32.xlu0 %v1141
    %v1143 = vpop.xlane.xlu0 %1142
    %v1144 = vsel %vm1098, %v1097, -inf
    %1145 = vmax.xlane.f32.xlu0 %v1144
    %v1146 = vpop.xlane.xlu0 %1145
    %s1147 = sld [smem:[#allocation2 + $0x3]]
    %v1148 = vstv %s1147
    %v1149 = vadd.f32 %v1101, %v1148
    %v1150 = vadd.f32 %v1104, %v1148
    %v1151 = vadd.f32 %v1107, %v1148
    %v1152 = vadd.f32 %v1110, %v1148
    %v1153 = vadd.f32 %v1113, %v1148
    %v1154 = vadd.f32 %v1116, %v1148
    %v1155 = vadd.f32 %v1119, %v1148
    %v1156 = vadd.f32 %v1122, %v1148
    %v1157 = vadd.f32 %v1125, %v1148
    %v1158 = vadd.f32 %v1128, %v1148
    %v1159 = vadd.f32 %v1131, %v1148
    %v1160 = vadd.f32 %v1134, %v1148
    %v1161 = vadd.f32 %v1137, %v1148
    %v1162 = vadd.f32 %v1140, %v1148
    %v1163 = vadd.f32 %v1143, %v1148
    %v1164 = vadd.f32 %v1146, %v1148
    %v1165 = vld [vmem:[%s2 + $0x2a] sm:$0x1]
    %v1166 = vperm.slane %v1165, 0
    %v1167 = vmul.f32 %v1149, %v1166
    %v1168 = vmul.f32 %v1150, %v1166
    %v1169 = vmul.f32 %v1151, %v1166
    %v1170 = vmul.f32 %v1152, %v1166
    %v1171 = vmul.f32 %v1153, %v1166
    %v1172 = vmul.f32 %v1154, %v1166
    %v1173 = vmul.f32 %v1155, %v1166
    %v1174 = vmul.f32 %v1156, %v1166
    %v1175 = vmul.f32 %v1157, %v1166
    %v1176 = vmul.f32 %v1158, %v1166
    %v1177 = vmul.f32 %v1159, %v1166
    %v1178 = vmul.f32 %v1160, %v1166
    %v1179 = vmul.f32 %v1161, %v1166
    %v1180 = vmul.f32 %v1162, %v1166
    %v1181 = vmul.f32 %v1163, %v1166
    %v1182 = vmul.f32 %v1164, %v1166
    %v1183 = vadd.f32 %v821, %v1167
    %v1184 = vadd.f32 %v824, %v1168
    %v1185 = vadd.f32 %v827, %v1169
    %v1186 = vadd.f32 %v830, %v1170
    %v1187 = vadd.f32 %v833, %v1171
    %v1188 = vadd.f32 %v836, %v1172
    %v1189 = vadd.f32 %v839, %v1173
    %v1190 = vadd.f32 %v842, %v1174
    %v1191 = vadd.f32 %v845, %v1175
    %v1192 = vadd.f32 %v848, %v1176
    %v1193 = vadd.f32 %v851, %v1177
    %v1194 = vadd.f32 %v854, %v1178
    %v1195 = vadd.f32 %v857, %v1179
    %v1196 = vadd.f32 %v860, %v1180
    %v1197 = vadd.f32 %v863, %v1181
    %v1198 = vadd.f32 %v866, %v1182
    %s1199 = sld [smem:[#allocation2 + $0x4]]
    %v1200 = vstv %s1199
    %v1201 = vmul.f32 %v868, %v1200
    %v1202 = vmul.f32 %v869, %v1200
    %v1203 = vmul.f32 %v870, %v1200
    %v1204 = vmul.f32 %v871, %v1200
    %v1205 = vmul.f32 %v872, %v1200
    %v1206 = vmul.f32 %v873, %v1200
    %v1207 = vmul.f32 %v874, %v1200
    %v1208 = vmul.f32 %v875, %v1200
    %v1209 = vmul.f32 %v876, %v1200
    %v1210 = vmul.f32 %v877, %v1200
    %v1211 = vmul.f32 %v878, %v1200
    %v1212 = vmul.f32 %v879, %v1200
    %v1213 = vmul.f32 %v880, %v1200
    %v1214 = vmul.f32 %v881, %v1200
    %v1215 = vmul.f32 %v882, %v1200
    %v1216 = vmul.f32 %v883, %v1200
    %s1217 = sld [smem:[#allocation2 + $0x5]]
    %v1218 = vstv %s1217
    %v1219 = vmul.f32 %v868, %v1218
    %v1220 = vmul.f32 %v869, %v1218
    %v1221 = vmul.f32 %v870, %v1218
    %v1222 = vmul.f32 %v871, %v1218
    %v1223 = vmul.f32 %v872, %v1218
    %v1224 = vmul.f32 %v873, %v1218
    %v1225 = vmul.f32 %v874, %v1218
    %v1226 = vmul.f32 %v875, %v1218
    %v1227 = vmul.f32 %v876, %v1218
    %v1228 = vmul.f32 %v877, %v1218
    %v1229 = vmul.f32 %v878, %v1218
    %v1230 = vmul.f32 %v879, %v1218
    %v1231 = vmul.f32 %v880, %v1218
    %v1232 = vmul.f32 %v881, %v1218
    %v1233 = vmul.f32 %v882, %v1218
    %v1234 = vmul.f32 %v883, %v1218
    %1251 = vrot.lane.b32.xlu0 %v1219, 127
    %v1252 = vpop.permute.xlu0 %1251
    %1253 = vrot.lane.b32.xlu0 %v1220, 127
    %v1254 = vpop.permute.xlu0 %1253
    %1255 = vrot.lane.b32.xlu0 %v1221, 127
    %v1256 = vpop.permute.xlu0 %1255
    %1257 = vrot.lane.b32.xlu0 %v1222, 127
    %v1258 = vpop.permute.xlu0 %1257
    %1259 = vrot.lane.b32.xlu0 %v1223, 127
    %v1260 = vpop.permute.xlu0 %1259
    %1261 = vrot.lane.b32.xlu0 %v1224, 127
    %v1262 = vpop.permute.xlu0 %1261
    %1263 = vrot.lane.b32.xlu0 %v1225, 127
    %v1264 = vpop.permute.xlu0 %1263
    %1265 = vrot.lane.b32.xlu0 %v1226, 127
    %v1266 = vpop.permute.xlu0 %1265
    %1267 = vrot.lane.b32.xlu0 %v1227, 127
    %v1268 = vpop.permute.xlu0 %1267
    %1269 = vrot.lane.b32.xlu0 %v1228, 127
    %v1270 = vpop.permute.xlu0 %1269
    %1271 = vrot.lane.b32.xlu0 %v1229, 127
    %v1272 = vpop.permute.xlu0 %1271
    %1273 = vrot.lane.b32.xlu0 %v1230, 127
    %v1274 = vpop.permute.xlu0 %1273
    %1275 = vrot.lane.b32.xlu0 %v1231, 127
    %v1276 = vpop.permute.xlu0 %1275
    %1277 = vrot.lane.b32.xlu0 %v1232, 127
    %v1278 = vpop.permute.xlu0 %1277
    %1279 = vrot.lane.b32.xlu0 %v1233, 127
    %v1280 = vpop.permute.xlu0 %1279
    %1281 = vrot.lane.b32.xlu0 %v1234, 127
    %v1282 = vpop.permute.xlu0 %1281
    %v1299 = vadd.f32 %v1201, %v1252
    %v1300 = vadd.f32 %v1202, %v1254
    %v1301 = vadd.f32 %v1203, %v1256
    %v1302 = vadd.f32 %v1204, %v1258
    %v1303 = vadd.f32 %v1205, %v1260
    %v1304 = vadd.f32 %v1206, %v1262
    %v1305 = vadd.f32 %v1207, %v1264
    %v1306 = vadd.f32 %v1208, %v1266
    %v1307 = vadd.f32 %v1209, %v1268
    %v1308 = vadd.f32 %v1210, %v1270
    %v1309 = vadd.f32 %v1211, %v1272
    %v1310 = vadd.f32 %v1212, %v1274
    %v1311 = vadd.f32 %v1213, %v1276
    %v1312 = vadd.f32 %v1214, %v1278
    %v1313 = vadd.f32 %v1215, %v1280
    %v1314 = vadd.f32 %v1216, %v1282
    %s1315 = sld [smem:[#allocation2 + $0x6]]
    %v1316 = vstv %s1315
    %v1317 = vmul.f32 %v868, %v1316
    %v1318 = vmul.f32 %v869, %v1316
    %v1319 = vmul.f32 %v870, %v1316
    %v1320 = vmul.f32 %v871, %v1316
    %v1321 = vmul.f32 %v872, %v1316
    %v1322 = vmul.f32 %v873, %v1316
    %v1323 = vmul.f32 %v874, %v1316
    %v1324 = vmul.f32 %v875, %v1316
    %v1325 = vmul.f32 %v876, %v1316
    %v1326 = vmul.f32 %v877, %v1316
    %v1327 = vmul.f32 %v878, %v1316
    %v1328 = vmul.f32 %v879, %v1316
    %v1329 = vmul.f32 %v880, %v1316
    %v1330 = vmul.f32 %v881, %v1316
    %v1331 = vmul.f32 %v882, %v1316
    %v1332 = vmul.f32 %v883, %v1316
    %1349 = vrot.lane.b32.xlu0 %v1317, 126
    %v1350 = vpop.permute.xlu0 %1349
    %1351 = vrot.lane.b32.xlu0 %v1318, 126
    %v1352 = vpop.permute.xlu0 %1351
    %1353 = vrot.lane.b32.xlu0 %v1319, 126
    %v1354 = vpop.permute.xlu0 %1353
    %1355 = vrot.lane.b32.xlu0 %v1320, 126
    %v1356 = vpop.permute.xlu0 %1355
    %1357 = vrot.lane.b32.xlu0 %v1321, 126
    %v1358 = vpop.permute.xlu0 %1357
    %1359 = vrot.lane.b32.xlu0 %v1322, 126
    %v1360 = vpop.permute.xlu0 %1359
    %1361 = vrot.lane.b32.xlu0 %v1323, 126
    %v1362 = vpop.permute.xlu0 %1361
    %1363 = vrot.lane.b32.xlu0 %v1324, 126
    %v1364 = vpop.permute.xlu0 %1363
    %1365 = vrot.lane.b32.xlu0 %v1325, 126
    %v1366 = vpop.permute.xlu0 %1365
    %1367 = vrot.lane.b32.xlu0 %v1326, 126
    %v1368 = vpop.permute.xlu0 %1367
    %1369 = vrot.lane.b32.xlu0 %v1327, 126
    %v1370 = vpop.permute.xlu0 %1369
    %1371 = vrot.lane.b32.xlu0 %v1328, 126
    %v1372 = vpop.permute.xlu0 %1371
    %1373 = vrot.lane.b32.xlu0 %v1329, 126
    %v1374 = vpop.permute.xlu0 %1373
    %1375 = vrot.lane.b32.xlu0 %v1330, 126
    %v1376 = vpop.permute.xlu0 %1375
    %1377 = vrot.lane.b32.xlu0 %v1331, 126
    %v1378 = vpop.permute.xlu0 %1377
    %1379 = vrot.lane.b32.xlu0 %v1332, 126
    %v1380 = vpop.permute.xlu0 %1379
    %v1397 = vadd.f32 %v1299, %v1350
    %v1398 = vadd.f32 %v1300, %v1352
    %v1399 = vadd.f32 %v1301, %v1354
    %v1400 = vadd.f32 %v1302, %v1356
    %v1401 = vadd.f32 %v1303, %v1358
    %v1402 = vadd.f32 %v1304, %v1360
    %v1403 = vadd.f32 %v1305, %v1362
    %v1404 = vadd.f32 %v1306, %v1364
    %v1405 = vadd.f32 %v1307, %v1366
    %v1406 = vadd.f32 %v1308, %v1368
    %v1407 = vadd.f32 %v1309, %v1370
    %v1408 = vadd.f32 %v1310, %v1372
    %v1409 = vadd.f32 %v1311, %v1374
    %v1410 = vadd.f32 %v1312, %v1376
    %v1411 = vadd.f32 %v1313, %v1378
    %v1412 = vadd.f32 %v1314, %v1380
    %v1413 = vsel %vm1098, %v1397, -inf
    %1414 = vmax.xlane.f32.xlu0 %v1413
    %v1415 = vpop.xlane.xlu0 %1414
    %v1416 = vsel %vm1098, %v1398, -inf
    %1417 = vmax.xlane.f32.xlu0 %v1416
    %v1418 = vpop.xlane.xlu0 %1417
    %v1419 = vsel %vm1098, %v1399, -inf
    %1420 = vmax.xlane.f32.xlu0 %v1419
    %v1421 = vpop.xlane.xlu0 %1420
    %v1422 = vsel %vm1098, %v1400, -inf
    %1423 = vmax.xlane.f32.xlu0 %v1422
    %v1424 = vpop.xlane.xlu0 %1423
    %v1425 = vsel %vm1098, %v1401, -inf
    %1426 = vmax.xlane.f32.xlu0 %v1425
    %v1427 = vpop.xlane.xlu0 %1426
    %v1428 = vsel %vm1098, %v1402, -inf
    %1429 = vmax.xlane.f32.xlu0 %v1428
    %v1430 = vpop.xlane.xlu0 %1429
    %v1431 = vsel %vm1098, %v1403, -inf
    %1432 = vmax.xlane.f32.xlu0 %v1431
    %v1433 = vpop.xlane.xlu0 %1432
    %v1434 = vsel %vm1098, %v1404, -inf
    %1435 = vmax.xlane.f32.xlu0 %v1434
    %v1436 = vpop.xlane.xlu0 %1435
    %v1437 = vsel %vm1098, %v1405, -inf
    %1438 = vmax.xlane.f32.xlu0 %v1437
    %v1439 = vpop.xlane.xlu0 %1438
    %v1440 = vsel %vm1098, %v1406, -inf
    %1441 = vmax.xlane.f32.xlu0 %v1440
    %v1442 = vpop.xlane.xlu0 %1441
    %v1443 = vsel %vm1098, %v1407, -inf
    %1444 = vmax.xlane.f32.xlu0 %v1443
    %v1445 = vpop.xlane.xlu0 %1444
    %v1446 = vsel %vm1098, %v1408, -inf
    %1447 = vmax.xlane.f32.xlu0 %v1446
    %v1448 = vpop.xlane.xlu0 %1447
    %v1449 = vsel %vm1098, %v1409, -inf
    %1450 = vmax.xlane.f32.xlu0 %v1449
    %v1451 = vpop.xlane.xlu0 %1450
    %v1452 = vsel %vm1098, %v1410, -inf
    %1453 = vmax.xlane.f32.xlu0 %v1452
    %v1454 = vpop.xlane.xlu0 %1453
    %v1455 = vsel %vm1098, %v1411, -inf
    %1456 = vmax.xlane.f32.xlu0 %v1455
    %v1457 = vpop.xlane.xlu0 %1456
    %v1458 = vsel %vm1098, %v1412, -inf
    %1459 = vmax.xlane.f32.xlu0 %v1458
    %v1460 = vpop.xlane.xlu0 %1459
    %s1461 = sld [smem:[#allocation2 + $0x7]]
    %v1462 = vstv %s1461
    %v1463 = vadd.f32 %v1415, %v1462
    %v1464 = vadd.f32 %v1418, %v1462
    %v1465 = vadd.f32 %v1421, %v1462
    %v1466 = vadd.f32 %v1424, %v1462
    %v1467 = vadd.f32 %v1427, %v1462
    %v1468 = vadd.f32 %v1430, %v1462
    %v1469 = vadd.f32 %v1433, %v1462
    %v1470 = vadd.f32 %v1436, %v1462
    %v1471 = vadd.f32 %v1439, %v1462
    %v1472 = vadd.f32 %v1442, %v1462
    %v1473 = vadd.f32 %v1445, %v1462
    %v1474 = vadd.f32 %v1448, %v1462
    %v1475 = vadd.f32 %v1451, %v1462
    %v1476 = vadd.f32 %v1454, %v1462
    %v1477 = vadd.f32 %v1457, %v1462
    %v1478 = vadd.f32 %v1460, %v1462
    %v1479 = vld [vmem:[%s2 + $0x2b] sm:$0x1]
    %v1480 = vperm.slane %v1479, 0
    %v1481 = vmul.f32 %v1463, %v1480
    %v1482 = vmul.f32 %v1464, %v1480
    %v1483 = vmul.f32 %v1465, %v1480
    %v1484 = vmul.f32 %v1466, %v1480
    %v1485 = vmul.f32 %v1467, %v1480
    %v1486 = vmul.f32 %v1468, %v1480
    %v1487 = vmul.f32 %v1469, %v1480
    %v1488 = vmul.f32 %v1470, %v1480
    %v1489 = vmul.f32 %v1471, %v1480
    %v1490 = vmul.f32 %v1472, %v1480
    %v1491 = vmul.f32 %v1473, %v1480
    %v1492 = vmul.f32 %v1474, %v1480
    %v1493 = vmul.f32 %v1475, %v1480
    %v1494 = vmul.f32 %v1476, %v1480
    %v1495 = vmul.f32 %v1477, %v1480
    %v1496 = vmul.f32 %v1478, %v1480
    %v1497 = vadd.f32 %v1183, %v1481
    %v1498 = vadd.f32 %v1184, %v1482
    %v1499 = vadd.f32 %v1185, %v1483
    %v1500 = vadd.f32 %v1186, %v1484
    %v1501 = vadd.f32 %v1187, %v1485
    %v1502 = vadd.f32 %v1188, %v1486
    %v1503 = vadd.f32 %v1189, %v1487
    %v1504 = vadd.f32 %v1190, %v1488
    %v1505 = vadd.f32 %v1191, %v1489
    %v1506 = vadd.f32 %v1192, %v1490
    %v1507 = vadd.f32 %v1193, %v1491
    %v1508 = vadd.f32 %v1194, %v1492
    %v1509 = vadd.f32 %v1195, %v1493
    %v1510 = vadd.f32 %v1196, %v1494
    %v1511 = vadd.f32 %v1197, %v1495
    %v1512 = vadd.f32 %v1198, %v1496
    %s1513 = sld [smem:[#allocation2 + $0x8]]
    %v1514 = vstv %s1513
    %v1515 = vmul.f32 %v868, %v1514
    %v1516 = vmul.f32 %v869, %v1514
    %v1517 = vmul.f32 %v870, %v1514
    %v1518 = vmul.f32 %v871, %v1514
    %v1519 = vmul.f32 %v872, %v1514
    %v1520 = vmul.f32 %v873, %v1514
    %v1521 = vmul.f32 %v874, %v1514
    %v1522 = vmul.f32 %v875, %v1514
    %v1523 = vmul.f32 %v876, %v1514
    %v1524 = vmul.f32 %v877, %v1514
    %v1525 = vmul.f32 %v878, %v1514
    %v1526 = vmul.f32 %v879, %v1514
    %v1527 = vmul.f32 %v880, %v1514
    %v1528 = vmul.f32 %v881, %v1514
    %v1529 = vmul.f32 %v882, %v1514
    %v1530 = vmul.f32 %v883, %v1514
    %s1531 = sld [smem:[#allocation2 + $0x9]]
    %v1532 = vstv %s1531
    %v1533 = vmul.f32 %v868, %v1532
    %v1534 = vmul.f32 %v869, %v1532
    %v1535 = vmul.f32 %v870, %v1532
    %v1536 = vmul.f32 %v871, %v1532
    %v1537 = vmul.f32 %v872, %v1532
    %v1538 = vmul.f32 %v873, %v1532
    %v1539 = vmul.f32 %v874, %v1532
    %v1540 = vmul.f32 %v875, %v1532
    %v1541 = vmul.f32 %v876, %v1532
    %v1542 = vmul.f32 %v877, %v1532
    %v1543 = vmul.f32 %v878, %v1532
    %v1544 = vmul.f32 %v879, %v1532
    %v1545 = vmul.f32 %v880, %v1532
    %v1546 = vmul.f32 %v881, %v1532
    %v1547 = vmul.f32 %v882, %v1532
    %v1548 = vmul.f32 %v883, %v1532
    %1565 = vrot.lane.b32.xlu0 %v1533, 127
    %v1566 = vpop.permute.xlu0 %1565
    %1567 = vrot.lane.b32.xlu0 %v1534, 127
    %v1568 = vpop.permute.xlu0 %1567
    %1569 = vrot.lane.b32.xlu0 %v1535, 127
    %v1570 = vpop.permute.xlu0 %1569
    %1571 = vrot.lane.b32.xlu0 %v1536, 127
    %v1572 = vpop.permute.xlu0 %1571
    %1573 = vrot.lane.b32.xlu0 %v1537, 127
    %v1574 = vpop.permute.xlu0 %1573
    %1575 = vrot.lane.b32.xlu0 %v1538, 127
    %v1576 = vpop.permute.xlu0 %1575
    %1577 = vrot.lane.b32.xlu0 %v1539, 127
    %v1578 = vpop.permute.xlu0 %1577
    %1579 = vrot.lane.b32.xlu0 %v1540, 127
    %v1580 = vpop.permute.xlu0 %1579
    %1581 = vrot.lane.b32.xlu0 %v1541, 127
    %v1582 = vpop.permute.xlu0 %1581
    %1583 = vrot.lane.b32.xlu0 %v1542, 127
    %v1584 = vpop.permute.xlu0 %1583
    %1585 = vrot.lane.b32.xlu0 %v1543, 127
    %v1586 = vpop.permute.xlu0 %1585
    %1587 = vrot.lane.b32.xlu0 %v1544, 127
    %v1588 = vpop.permute.xlu0 %1587
    %1589 = vrot.lane.b32.xlu0 %v1545, 127
    %v1590 = vpop.permute.xlu0 %1589
    %1591 = vrot.lane.b32.xlu0 %v1546, 127
    %v1592 = vpop.permute.xlu0 %1591
    %1593 = vrot.lane.b32.xlu0 %v1547, 127
    %v1594 = vpop.permute.xlu0 %1593
    %1595 = vrot.lane.b32.xlu0 %v1548, 127
    %v1596 = vpop.permute.xlu0 %1595
    %v1613 = vadd.f32 %v1515, %v1566
    %v1614 = vadd.f32 %v1516, %v1568
    %v1615 = vadd.f32 %v1517, %v1570
    %v1616 = vadd.f32 %v1518, %v1572
    %v1617 = vadd.f32 %v1519, %v1574
    %v1618 = vadd.f32 %v1520, %v1576
    %v1619 = vadd.f32 %v1521, %v1578
    %v1620 = vadd.f32 %v1522, %v1580
    %v1621 = vadd.f32 %v1523, %v1582
    %v1622 = vadd.f32 %v1524, %v1584
    %v1623 = vadd.f32 %v1525, %v1586
    %v1624 = vadd.f32 %v1526, %v1588
    %v1625 = vadd.f32 %v1527, %v1590
    %v1626 = vadd.f32 %v1528, %v1592
    %v1627 = vadd.f32 %v1529, %v1594
    %v1628 = vadd.f32 %v1530, %v1596
    %s1629 = sld [smem:[#allocation2 + $0xa]]
    %v1630 = vstv %s1629
    %v1631 = vmul.f32 %v868, %v1630
    %v1632 = vmul.f32 %v869, %v1630
    %v1633 = vmul.f32 %v870, %v1630
    %v1634 = vmul.f32 %v871, %v1630
    %v1635 = vmul.f32 %v872, %v1630
    %v1636 = vmul.f32 %v873, %v1630
    %v1637 = vmul.f32 %v874, %v1630
    %v1638 = vmul.f32 %v875, %v1630
    %v1639 = vmul.f32 %v876, %v1630
    %v1640 = vmul.f32 %v877, %v1630
    %v1641 = vmul.f32 %v878, %v1630
    %v1642 = vmul.f32 %v879, %v1630
    %v1643 = vmul.f32 %v880, %v1630
    %v1644 = vmul.f32 %v881, %v1630
    %v1645 = vmul.f32 %v882, %v1630
    %v1646 = vmul.f32 %v883, %v1630
    %1663 = vrot.lane.b32.xlu0 %v1631, 126
    %v1664 = vpop.permute.xlu0 %1663
    %1665 = vrot.lane.b32.xlu0 %v1632, 126
    %v1666 = vpop.permute.xlu0 %1665
    %1667 = vrot.lane.b32.xlu0 %v1633, 126
    %v1668 = vpop.permute.xlu0 %1667
    %1669 = vrot.lane.b32.xlu0 %v1634, 126
    %v1670 = vpop.permute.xlu0 %1669
    %1671 = vrot.lane.b32.xlu0 %v1635, 126
    %v1672 = vpop.permute.xlu0 %1671
    %1673 = vrot.lane.b32.xlu0 %v1636, 126
    %v1674 = vpop.permute.xlu0 %1673
    %1675 = vrot.lane.b32.xlu0 %v1637, 126
    %v1676 = vpop.permute.xlu0 %1675
    %1677 = vrot.lane.b32.xlu0 %v1638, 126
    %v1678 = vpop.permute.xlu0 %1677
    %1679 = vrot.lane.b32.xlu0 %v1639, 126
    %v1680 = vpop.permute.xlu0 %1679
    %1681 = vrot.lane.b32.xlu0 %v1640, 126
    %v1682 = vpop.permute.xlu0 %1681
    %1683 = vrot.lane.b32.xlu0 %v1641, 126
    %v1684 = vpop.permute.xlu0 %1683
    %1685 = vrot.lane.b32.xlu0 %v1642, 126
    %v1686 = vpop.permute.xlu0 %1685
    %1687 = vrot.lane.b32.xlu0 %v1643, 126
    %v1688 = vpop.permute.xlu0 %1687
    %1689 = vrot.lane.b32.xlu0 %v1644, 126
    %v1690 = vpop.permute.xlu0 %1689
    %1691 = vrot.lane.b32.xlu0 %v1645, 126
    %v1692 = vpop.permute.xlu0 %1691
    %1693 = vrot.lane.b32.xlu0 %v1646, 126
    %v1694 = vpop.permute.xlu0 %1693
    %v1711 = vadd.f32 %v1613, %v1664
    %v1712 = vadd.f32 %v1614, %v1666
    %v1713 = vadd.f32 %v1615, %v1668
    %v1714 = vadd.f32 %v1616, %v1670
    %v1715 = vadd.f32 %v1617, %v1672
    %v1716 = vadd.f32 %v1618, %v1674
    %v1717 = vadd.f32 %v1619, %v1676
    %v1718 = vadd.f32 %v1620, %v1678
    %v1719 = vadd.f32 %v1621, %v1680
    %v1720 = vadd.f32 %v1622, %v1682
    %v1721 = vadd.f32 %v1623, %v1684
    %v1722 = vadd.f32 %v1624, %v1686
    %v1723 = vadd.f32 %v1625, %v1688
    %v1724 = vadd.f32 %v1626, %v1690
    %v1725 = vadd.f32 %v1627, %v1692
    %v1726 = vadd.f32 %v1628, %v1694
    %v1727 = vsel %vm1098, %v1711, -inf
    %1728 = vmax.xlane.f32.xlu0 %v1727
    %v1729 = vpop.xlane.xlu0 %1728
    %v1730 = vsel %vm1098, %v1712, -inf
    %1731 = vmax.xlane.f32.xlu0 %v1730
    %v1732 = vpop.xlane.xlu0 %1731
    %v1733 = vsel %vm1098, %v1713, -inf
    %1734 = vmax.xlane.f32.xlu0 %v1733
    %v1735 = vpop.xlane.xlu0 %1734
    %v1736 = vsel %vm1098, %v1714, -inf
    %1737 = vmax.xlane.f32.xlu0 %v1736
    %v1738 = vpop.xlane.xlu0 %1737
    %v1739 = vsel %vm1098, %v1715, -inf
    %1740 = vmax.xlane.f32.xlu0 %v1739
    %v1741 = vpop.xlane.xlu0 %1740
    %v1742 = vsel %vm1098, %v1716, -inf
    %1743 = vmax.xlane.f32.xlu0 %v1742
    %v1744 = vpop.xlane.xlu0 %1743
    %v1745 = vsel %vm1098, %v1717, -inf
    %1746 = vmax.xlane.f32.xlu0 %v1745
    %v1747 = vpop.xlane.xlu0 %1746
    %v1748 = vsel %vm1098, %v1718, -inf
    %1749 = vmax.xlane.f32.xlu0 %v1748
    %v1750 = vpop.xlane.xlu0 %1749
    %v1751 = vsel %vm1098, %v1719, -inf
    %1752 = vmax.xlane.f32.xlu0 %v1751
    %v1753 = vpop.xlane.xlu0 %1752
    %v1754 = vsel %vm1098, %v1720, -inf
    %1755 = vmax.xlane.f32.xlu0 %v1754
    %v1756 = vpop.xlane.xlu0 %1755
    %v1757 = vsel %vm1098, %v1721, -inf
    %1758 = vmax.xlane.f32.xlu0 %v1757
    %v1759 = vpop.xlane.xlu0 %1758
    %v1760 = vsel %vm1098, %v1722, -inf
    %1761 = vmax.xlane.f32.xlu0 %v1760
    %v1762 = vpop.xlane.xlu0 %1761
    %v1763 = vsel %vm1098, %v1723, -inf
    %1764 = vmax.xlane.f32.xlu0 %v1763
    %v1765 = vpop.xlane.xlu0 %1764
    %v1766 = vsel %vm1098, %v1724, -inf
    %1767 = vmax.xlane.f32.xlu0 %v1766
    %v1768 = vpop.xlane.xlu0 %1767
    %v1769 = vsel %vm1098, %v1725, -inf
    %1770 = vmax.xlane.f32.xlu0 %v1769
    %v1771 = vpop.xlane.xlu0 %1770
    %v1772 = vsel %vm1098, %v1726, -inf
    %1773 = vmax.xlane.f32.xlu0 %v1772
    %v1774 = vpop.xlane.xlu0 %1773
    %s1775 = sld [smem:[#allocation2 + $0xb]]
    %v1776 = vstv %s1775
    %v1777 = vadd.f32 %v1729, %v1776
    %v1778 = vadd.f32 %v1732, %v1776
    %v1779 = vadd.f32 %v1735, %v1776
    %v1780 = vadd.f32 %v1738, %v1776
    %v1781 = vadd.f32 %v1741, %v1776
    %v1782 = vadd.f32 %v1744, %v1776
    %v1783 = vadd.f32 %v1747, %v1776
    %v1784 = vadd.f32 %v1750, %v1776
    %v1785 = vadd.f32 %v1753, %v1776
    %v1786 = vadd.f32 %v1756, %v1776
    %v1787 = vadd.f32 %v1759, %v1776
    %v1788 = vadd.f32 %v1762, %v1776
    %v1789 = vadd.f32 %v1765, %v1776
    %v1790 = vadd.f32 %v1768, %v1776
    %v1791 = vadd.f32 %v1771, %v1776
    %v1792 = vadd.f32 %v1774, %v1776
    %v1793 = vld [vmem:[%s2 + $0x2c] sm:$0x1]
    %v1794 = vperm.slane %v1793, 0
    %v1795 = vmul.f32 %v1777, %v1794
    %v1796 = vmul.f32 %v1778, %v1794
    %v1797 = vmul.f32 %v1779, %v1794
    %v1798 = vmul.f32 %v1780, %v1794
    %v1799 = vmul.f32 %v1781, %v1794
    %v1800 = vmul.f32 %v1782, %v1794
    %v1801 = vmul.f32 %v1783, %v1794
    %v1802 = vmul.f32 %v1784, %v1794
    %v1803 = vmul.f32 %v1785, %v1794
    %v1804 = vmul.f32 %v1786, %v1794
    %v1805 = vmul.f32 %v1787, %v1794
    %v1806 = vmul.f32 %v1788, %v1794
    %v1807 = vmul.f32 %v1789, %v1794
    %v1808 = vmul.f32 %v1790, %v1794
    %v1809 = vmul.f32 %v1791, %v1794
    %v1810 = vmul.f32 %v1792, %v1794
    %v1811 = vadd.f32 %v1497, %v1795
    %v1812 = vadd.f32 %v1498, %v1796
    %v1813 = vadd.f32 %v1499, %v1797
    %v1814 = vadd.f32 %v1500, %v1798
    %v1815 = vadd.f32 %v1501, %v1799
    %v1816 = vadd.f32 %v1502, %v1800
    %v1817 = vadd.f32 %v1503, %v1801
    %v1818 = vadd.f32 %v1504, %v1802
    %v1819 = vadd.f32 %v1505, %v1803
    %v1820 = vadd.f32 %v1506, %v1804
    %v1821 = vadd.f32 %v1507, %v1805
    %v1822 = vadd.f32 %v1508, %v1806
    %v1823 = vadd.f32 %v1509, %v1807
    %v1824 = vadd.f32 %v1510, %v1808
    %v1825 = vadd.f32 %v1511, %v1809
    %v1826 = vadd.f32 %v1512, %v1810
    %s1827 = sld [smem:[#allocation2 + $0xc]]
    %v1828 = vstv %s1827
    %v1829 = vmul.f32 %v868, %v1828
    %v1830 = vmul.f32 %v869, %v1828
    %v1831 = vmul.f32 %v870, %v1828
    %v1832 = vmul.f32 %v871, %v1828
    %v1833 = vmul.f32 %v872, %v1828
    %v1834 = vmul.f32 %v873, %v1828
    %v1835 = vmul.f32 %v874, %v1828
    %v1836 = vmul.f32 %v875, %v1828
    %v1837 = vmul.f32 %v876, %v1828
    %v1838 = vmul.f32 %v877, %v1828
    %v1839 = vmul.f32 %v878, %v1828
    %v1840 = vmul.f32 %v879, %v1828
    %v1841 = vmul.f32 %v880, %v1828
    %v1842 = vmul.f32 %v881, %v1828
    %v1843 = vmul.f32 %v882, %v1828
    %v1844 = vmul.f32 %v883, %v1828
    %s1845 = sld [smem:[#allocation2 + $0xd]]
    %v1846 = vstv %s1845
    %v1847 = vmul.f32 %v868, %v1846
    %v1848 = vmul.f32 %v869, %v1846
    %v1849 = vmul.f32 %v870, %v1846
    %v1850 = vmul.f32 %v871, %v1846
    %v1851 = vmul.f32 %v872, %v1846
    %v1852 = vmul.f32 %v873, %v1846
    %v1853 = vmul.f32 %v874, %v1846
    %v1854 = vmul.f32 %v875, %v1846
    %v1855 = vmul.f32 %v876, %v1846
    %v1856 = vmul.f32 %v877, %v1846
    %v1857 = vmul.f32 %v878, %v1846
    %v1858 = vmul.f32 %v879, %v1846
    %v1859 = vmul.f32 %v880, %v1846
    %v1860 = vmul.f32 %v881, %v1846
    %v1861 = vmul.f32 %v882, %v1846
    %v1862 = vmul.f32 %v883, %v1846
    %1879 = vrot.lane.b32.xlu0 %v1847, 127
    %v1880 = vpop.permute.xlu0 %1879
    %1881 = vrot.lane.b32.xlu0 %v1848, 127
    %v1882 = vpop.permute.xlu0 %1881
    %1883 = vrot.lane.b32.xlu0 %v1849, 127
    %v1884 = vpop.permute.xlu0 %1883
    %1885 = vrot.lane.b32.xlu0 %v1850, 127
    %v1886 = vpop.permute.xlu0 %1885
    %1887 = vrot.lane.b32.xlu0 %v1851, 127
    %v1888 = vpop.permute.xlu0 %1887
    %1889 = vrot.lane.b32.xlu0 %v1852, 127
    %v1890 = vpop.permute.xlu0 %1889
    %1891 = vrot.lane.b32.xlu0 %v1853, 127
    %v1892 = vpop.permute.xlu0 %1891
    %1893 = vrot.lane.b32.xlu0 %v1854, 127
    %v1894 = vpop.permute.xlu0 %1893
    %1895 = vrot.lane.b32.xlu0 %v1855, 127
    %v1896 = vpop.permute.xlu0 %1895
    %1897 = vrot.lane.b32.xlu0 %v1856, 127
    %v1898 = vpop.permute.xlu0 %1897
    %1899 = vrot.lane.b32.xlu0 %v1857, 127
    %v1900 = vpop.permute.xlu0 %1899
    %1901 = vrot.lane.b32.xlu0 %v1858, 127
    %v1902 = vpop.permute.xlu0 %1901
    %1903 = vrot.lane.b32.xlu0 %v1859, 127
    %v1904 = vpop.permute.xlu0 %1903
    %1905 = vrot.lane.b32.xlu0 %v1860, 127
    %v1906 = vpop.permute.xlu0 %1905
    %1907 = vrot.lane.b32.xlu0 %v1861, 127
    %v1908 = vpop.permute.xlu0 %1907
    %1909 = vrot.lane.b32.xlu0 %v1862, 127
    %v1910 = vpop.permute.xlu0 %1909
    %v1927 = vadd.f32 %v1829, %v1880
    %v1928 = vadd.f32 %v1830, %v1882
    %v1929 = vadd.f32 %v1831, %v1884
    %v1930 = vadd.f32 %v1832, %v1886
    %v1931 = vadd.f32 %v1833, %v1888
    %v1932 = vadd.f32 %v1834, %v1890
    %v1933 = vadd.f32 %v1835, %v1892
    %v1934 = vadd.f32 %v1836, %v1894
    %v1935 = vadd.f32 %v1837, %v1896
    %v1936 = vadd.f32 %v1838, %v1898
    %v1937 = vadd.f32 %v1839, %v1900
    %v1938 = vadd.f32 %v1840, %v1902
    %v1939 = vadd.f32 %v1841, %v1904
    %v1940 = vadd.f32 %v1842, %v1906
    %v1941 = vadd.f32 %v1843, %v1908
    %v1942 = vadd.f32 %v1844, %v1910
    %s1943 = sld [smem:[#allocation2 + $0xe]]
    %v1944 = vstv %s1943
    %v1945 = vmul.f32 %v868, %v1944
    %v1946 = vmul.f32 %v869, %v1944
    %v1947 = vmul.f32 %v870, %v1944
    %v1948 = vmul.f32 %v871, %v1944
    %v1949 = vmul.f32 %v872, %v1944
    %v1950 = vmul.f32 %v873, %v1944
    %v1951 = vmul.f32 %v874, %v1944
    %v1952 = vmul.f32 %v875, %v1944
    %v1953 = vmul.f32 %v876, %v1944
    %v1954 = vmul.f32 %v877, %v1944
    %v1955 = vmul.f32 %v878, %v1944
    %v1956 = vmul.f32 %v879, %v1944
    %v1957 = vmul.f32 %v880, %v1944
    %v1958 = vmul.f32 %v881, %v1944
    %v1959 = vmul.f32 %v882, %v1944
    %v1960 = vmul.f32 %v883, %v1944
    %1977 = vrot.lane.b32.xlu0 %v1945, 126
    %v1978 = vpop.permute.xlu0 %1977
    %1979 = vrot.lane.b32.xlu0 %v1946, 126
    %v1980 = vpop.permute.xlu0 %1979
    %1981 = vrot.lane.b32.xlu0 %v1947, 126
    %v1982 = vpop.permute.xlu0 %1981
    %1983 = vrot.lane.b32.xlu0 %v1948, 126
    %v1984 = vpop.permute.xlu0 %1983
    %1985 = vrot.lane.b32.xlu0 %v1949, 126
    %v1986 = vpop.permute.xlu0 %1985
    %1987 = vrot.lane.b32.xlu0 %v1950, 126
    %v1988 = vpop.permute.xlu0 %1987
    %1989 = vrot.lane.b32.xlu0 %v1951, 126
    %v1990 = vpop.permute.xlu0 %1989
    %1991 = vrot.lane.b32.xlu0 %v1952, 126
    %v1992 = vpop.permute.xlu0 %1991
    %1993 = vrot.lane.b32.xlu0 %v1953, 126
    %v1994 = vpop.permute.xlu0 %1993
    %1995 = vrot.lane.b32.xlu0 %v1954, 126
    %v1996 = vpop.permute.xlu0 %1995
    %1997 = vrot.lane.b32.xlu0 %v1955, 126
    %v1998 = vpop.permute.xlu0 %1997
    %1999 = vrot.lane.b32.xlu0 %v1956, 126
    %v2000 = vpop.permute.xlu0 %1999
    %2001 = vrot.lane.b32.xlu0 %v1957, 126
    %v2002 = vpop.permute.xlu0 %2001
    %2003 = vrot.lane.b32.xlu0 %v1958, 126
    %v2004 = vpop.permute.xlu0 %2003
    %2005 = vrot.lane.b32.xlu0 %v1959, 126
    %v2006 = vpop.permute.xlu0 %2005
    %2007 = vrot.lane.b32.xlu0 %v1960, 126
    %v2008 = vpop.permute.xlu0 %2007
    %v2025 = vadd.f32 %v1927, %v1978
    %v2026 = vadd.f32 %v1928, %v1980
    %v2027 = vadd.f32 %v1929, %v1982
    %v2028 = vadd.f32 %v1930, %v1984
    %v2029 = vadd.f32 %v1931, %v1986
    %v2030 = vadd.f32 %v1932, %v1988
    %v2031 = vadd.f32 %v1933, %v1990
    %v2032 = vadd.f32 %v1934, %v1992
    %v2033 = vadd.f32 %v1935, %v1994
    %v2034 = vadd.f32 %v1936, %v1996
    %v2035 = vadd.f32 %v1937, %v1998
    %v2036 = vadd.f32 %v1938, %v2000
    %v2037 = vadd.f32 %v1939, %v2002
    %v2038 = vadd.f32 %v1940, %v2004
    %v2039 = vadd.f32 %v1941, %v2006
    %v2040 = vadd.f32 %v1942, %v2008
    %v2041 = vsel %vm1098, %v2025, -inf
    %2042 = vmax.xlane.f32.xlu0 %v2041
    %v2043 = vpop.xlane.xlu0 %2042
    %v2044 = vsel %vm1098, %v2026, -inf
    %2045 = vmax.xlane.f32.xlu0 %v2044
    %v2046 = vpop.xlane.xlu0 %2045
    %v2047 = vsel %vm1098, %v2027, -inf
    %2048 = vmax.xlane.f32.xlu0 %v2047
    %v2049 = vpop.xlane.xlu0 %2048
    %v2050 = vsel %vm1098, %v2028, -inf
    %2051 = vmax.xlane.f32.xlu0 %v2050
    %v2052 = vpop.xlane.xlu0 %2051
    %v2053 = vsel %vm1098, %v2029, -inf
    %2054 = vmax.xlane.f32.xlu0 %v2053
    %v2055 = vpop.xlane.xlu0 %2054
    %v2056 = vsel %vm1098, %v2030, -inf
    %2057 = vmax.xlane.f32.xlu0 %v2056
    %v2058 = vpop.xlane.xlu0 %2057
    %v2059 = vsel %vm1098, %v2031, -inf
    %2060 = vmax.xlane.f32.xlu0 %v2059
    %v2061 = vpop.xlane.xlu0 %2060
    %v2062 = vsel %vm1098, %v2032, -inf
    %2063 = vmax.xlane.f32.xlu0 %v2062
    %v2064 = vpop.xlane.xlu0 %2063
    %v2065 = vsel %vm1098, %v2033, -inf
    %2066 = vmax.xlane.f32.xlu0 %v2065
    %v2067 = vpop.xlane.xlu0 %2066
    %v2068 = vsel %vm1098, %v2034, -inf
    %2069 = vmax.xlane.f32.xlu0 %v2068
    %v2070 = vpop.xlane.xlu0 %2069
    %v2071 = vsel %vm1098, %v2035, -inf
    %2072 = vmax.xlane.f32.xlu0 %v2071
    %v2073 = vpop.xlane.xlu0 %2072
    %v2074 = vsel %vm1098, %v2036, -inf
    %2075 = vmax.xlane.f32.xlu0 %v2074
    %v2076 = vpop.xlane.xlu0 %2075
    %v2077 = vsel %vm1098, %v2037, -inf
    %2078 = vmax.xlane.f32.xlu0 %v2077
    %v2079 = vpop.xlane.xlu0 %2078
    %v2080 = vsel %vm1098, %v2038, -inf
    %2081 = vmax.xlane.f32.xlu0 %v2080
    %v2082 = vpop.xlane.xlu0 %2081
    %v2083 = vsel %vm1098, %v2039, -inf
    %2084 = vmax.xlane.f32.xlu0 %v2083
    %v2085 = vpop.xlane.xlu0 %2084
    %v2086 = vsel %vm1098, %v2040, -inf
    %2087 = vmax.xlane.f32.xlu0 %v2086
    %v2088 = vpop.xlane.xlu0 %2087
    %s2089 = sld [smem:[#allocation2 + $0xf]]
    %v2090 = vstv %s2089
    %v2091 = vadd.f32 %v2043, %v2090
    %v2092 = vadd.f32 %v2046, %v2090
    %v2093 = vadd.f32 %v2049, %v2090
    %v2094 = vadd.f32 %v2052, %v2090
    %v2095 = vadd.f32 %v2055, %v2090
    %v2096 = vadd.f32 %v2058, %v2090
    %v2097 = vadd.f32 %v2061, %v2090
    %v2098 = vadd.f32 %v2064, %v2090
    %v2099 = vadd.f32 %v2067, %v2090
    %v2100 = vadd.f32 %v2070, %v2090
    %v2101 = vadd.f32 %v2073, %v2090
    %v2102 = vadd.f32 %v2076, %v2090
    %v2103 = vadd.f32 %v2079, %v2090
    %v2104 = vadd.f32 %v2082, %v2090
    %v2105 = vadd.f32 %v2085, %v2090
    %v2106 = vadd.f32 %v2088, %v2090
    %v2107 = vld [vmem:[%s2 + $0x2d] sm:$0x1]
    %v2108 = vperm.slane %v2107, 0
    %v2109 = vmul.f32 %v2091, %v2108
    %v2110 = vmul.f32 %v2092, %v2108
    %v2111 = vmul.f32 %v2093, %v2108
    %v2112 = vmul.f32 %v2094, %v2108
    %v2113 = vmul.f32 %v2095, %v2108
    %v2114 = vmul.f32 %v2096, %v2108
    %v2115 = vmul.f32 %v2097, %v2108
    %v2116 = vmul.f32 %v2098, %v2108
    %v2117 = vmul.f32 %v2099, %v2108
    %v2118 = vmul.f32 %v2100, %v2108
    %v2119 = vmul.f32 %v2101, %v2108
    %v2120 = vmul.f32 %v2102, %v2108
    %v2121 = vmul.f32 %v2103, %v2108
    %v2122 = vmul.f32 %v2104, %v2108
    %v2123 = vmul.f32 %v2105, %v2108
    %v2124 = vmul.f32 %v2106, %v2108
    %v2125 = vadd.f32 %v1811, %v2109
    %v2126 = vadd.f32 %v1812, %v2110
    %v2127 = vadd.f32 %v1813, %v2111
    %v2128 = vadd.f32 %v1814, %v2112
    %v2129 = vadd.f32 %v1815, %v2113
    %v2130 = vadd.f32 %v1816, %v2114
    %v2131 = vadd.f32 %v1817, %v2115
    %v2132 = vadd.f32 %v1818, %v2116
    %v2133 = vadd.f32 %v1819, %v2117
    %v2134 = vadd.f32 %v1820, %v2118
    %v2135 = vadd.f32 %v1821, %v2119
    %v2136 = vadd.f32 %v1822, %v2120
    %v2137 = vadd.f32 %v1823, %v2121
    %v2138 = vadd.f32 %v1824, %v2122
    %v2139 = vadd.f32 %v1825, %v2123
    %v2140 = vadd.f32 %v1826, %v2124
    %vm2141 = vcmp.ge.f32.partialorder %v2125, 0.0
    %vm2142 = vcmp.ge.f32.partialorder %v2126, 0.0
    %vm2143 = vcmp.ge.f32.partialorder %v2127, 0.0
    %vm2144 = vcmp.ge.f32.partialorder %v2128, 0.0
    %vm2145 = vcmp.ge.f32.partialorder %v2129, 0.0
    %vm2146 = vcmp.ge.f32.partialorder %v2130, 0.0
    %vm2147 = vcmp.ge.f32.partialorder %v2131, 0.0
    %vm2148 = vcmp.ge.f32.partialorder %v2132, 0.0
    %vm2149 = vcmp.ge.f32.partialorder %v2133, 0.0
    %vm2150 = vcmp.ge.f32.partialorder %v2134, 0.0
    %vm2151 = vcmp.ge.f32.partialorder %v2135, 0.0
    %vm2152 = vcmp.ge.f32.partialorder %v2136, 0.0
    %vm2153 = vcmp.ge.f32.partialorder %v2137, 0.0
    %vm2154 = vcmp.ge.f32.partialorder %v2138, 0.0
    %vm2155 = vcmp.ge.f32.partialorder %v2139, 0.0
    %vm2156 = vcmp.ge.f32.partialorder %v2140, 0.0
    %v2157 = vmul.f32 %v2125, 0.01
    %v2158 = vmul.f32 %v2126, 0.01
    %v2159 = vmul.f32 %v2127, 0.01
    %v2160 = vmul.f32 %v2128, 0.01
    %v2161 = vmul.f32 %v2129, 0.01
    %v2162 = vmul.f32 %v2130, 0.01
    %v2163 = vmul.f32 %v2131, 0.01
    %v2164 = vmul.f32 %v2132, 0.01
    %v2165 = vmul.f32 %v2133, 0.01
    %v2166 = vmul.f32 %v2134, 0.01
    %v2167 = vmul.f32 %v2135, 0.01
    %v2168 = vmul.f32 %v2136, 0.01
    %v2169 = vmul.f32 %v2137, 0.01
    %v2170 = vmul.f32 %v2138, 0.01
    %v2171 = vmul.f32 %v2139, 0.01
    %v2172 = vmul.f32 %v2140, 0.01
    %v2173 = vsel %vm2141, %v2125, %v2157
    %v2174 = vsel %vm2142, %v2126, %v2158
    %v2175 = vsel %vm2143, %v2127, %v2159
    %v2176 = vsel %vm2144, %v2128, %v2160
    %v2177 = vsel %vm2145, %v2129, %v2161
    %v2178 = vsel %vm2146, %v2130, %v2162
    %v2179 = vsel %vm2147, %v2131, %v2163
    %v2180 = vsel %vm2148, %v2132, %v2164
    %v2181 = vsel %vm2149, %v2133, %v2165
    %v2182 = vsel %vm2150, %v2134, %v2166
    %v2183 = vsel %vm2151, %v2135, %v2167
    %v2184 = vsel %vm2152, %v2136, %v2168
    %v2185 = vsel %vm2153, %v2137, %v2169
    %v2186 = vsel %vm2154, %v2138, %v2170
    %v2187 = vsel %vm2155, %v2139, %v2171
    %v2188 = vsel %vm2156, %v2140, %v2172
    %2190 = vrot.lane.b32.xlu0 %v2174, 32
    %v2191 = vpop.permute.xlu0 %2190
    %2194 = vrot.lane.b32.xlu0 %v2175, 64
    %v2195 = vpop.permute.xlu0 %2194
    %2198 = vrot.lane.b32.xlu0 %v2176, 96
    %v2199 = vpop.permute.xlu0 %2198
    %2202 = vrot.lane.b32.xlu0 %v2178, 32
    %v2203 = vpop.permute.xlu0 %2202
    %2206 = vrot.lane.b32.xlu0 %v2179, 64
    %v2207 = vpop.permute.xlu0 %2206
    %2210 = vrot.lane.b32.xlu0 %v2180, 96
    %v2211 = vpop.permute.xlu0 %2210
    %2214 = vrot.lane.b32.xlu0 %v2182, 32
    %v2215 = vpop.permute.xlu0 %2214
    %2218 = vrot.lane.b32.xlu0 %v2183, 64
    %v2219 = vpop.permute.xlu0 %2218
    %2222 = vrot.lane.b32.xlu0 %v2184, 96
    %v2223 = vpop.permute.xlu0 %2222
    %2226 = vrot.lane.b32.xlu0 %v2186, 32
    %v2227 = vpop.permute.xlu0 %2226
    %2230 = vrot.lane.b32.xlu0 %v2187, 64
    %v2231 = vpop.permute.xlu0 %2230
    %2234 = vrot.lane.b32.xlu0 %v2188, 96
    %v2235 = vpop.permute.xlu0 %2234
    %v2237 = vsel %vm164, %v2173, %v2191
    %vm2238 = vcmask 523264
    %v2239 = vsel %vm2238, %v2237, %v2195
    %vm2240 = vcmask 785408
    %v2241 = vsel %vm2240, %v2239, %v2199
    %v2242 = vsel %vm164, %v2177, %v2203
    %v2243 = vsel %vm2238, %v2242, %v2207
    %v2244 = vsel %vm2240, %v2243, %v2211
    %v2245 = vsel %vm164, %v2181, %v2215
    %v2246 = vsel %vm2238, %v2245, %v2219
    %v2247 = vsel %vm2240, %v2246, %v2223
    %v2248 = vsel %vm164, %v2185, %v2227
    %v2249 = vsel %vm2238, %v2248, %v2231
    %v2250 = vsel %vm2240, %v2249, %v2235
    %2251 = vst [vmem:[#allocation5] sm:$0xff] %v2241
    %2252 = vst [vmem:[#allocation5 + $0x8] sm:$0xff] %v2244
    %2253 = vst [vmem:[#allocation5 + $0x10] sm:$0xff] %v2247
    %2254 = vst [vmem:[#allocation5 + $0x18] sm:$0xff] %v2250
    // Predicated region
    $region22: #{tpu_custom_call.1} parent=1 // pred_check
      _
    $region23: #{tpu_custom_call.1} parent=1 // pred_check_branch
      %2256 = sbr.rel (0) target = $region25
    $region24: #{tpu_custom_call.1} parent=1 // pred_region
      %2258 = vsyncadd [#allocation3], 0
      %s2260 = sshll.u32 [#allocation5], 4
      %s2261 = int_to_ptr.vmem [resolvable:$true] %s2260
      %s2262 = sshll.u32 %s4, 4
      %s2263 = int_to_ptr.hbm [resolvable:$true] %s2262
      %2265 = dma.vmem_to_hbm [thread:$0]  %s2261, 512, %s2263, [#allocation3]
    $region25: #{tpu_custom_call.1} parent=1 // pred_fallthru
      _
    // Predicated region
    $region26: #{tpu_custom_call.1} parent=1 // pred_check
      _
    $region27: #{tpu_custom_call.1} parent=1 // pred_check_branch
      %2267 = sbr.rel (0) target = $region29
    $region28: #{tpu_custom_call.1} parent=1 // pred_region
      %2269 = dma.done [#allocation3], 512
    $region29: #{tpu_custom_call.1} parent=1 // pred_fallthru
      _
    %2270 = vsyncpa [#allocation3], 1
    %2271 = vsyncpa [#allocation4], 1

</llo_original>
